<compile_context>
chip_gen: v7x
topology: tpu7x:2x2x1
jax: 0.10.0
libtpu: 0.0.40
codegen_flags: <defaults>
</compile_context>

<pallas_src>
import jax
import jax.numpy as jnp
from jax.experimental import pallas as pl
from jax.experimental.pallas import tpu as pltpu

# ---- module constants (from the PyTorch spec) -------------------------------
FEATURE_V_N = 256
IN_F_N = FEATURE_V_N * 2          # 512
MID_F_N = (256, 128, 64, 32)
DIVID_N = 4
# TODO(synk): len(FontStyleChecker.defaultListIndex) is not given in the spec;
# use a synthetic stand-in output width.
OUT_F_N = 10
NEG_SLOPE = 0.2                   # LeakyReLU(negative_slope=0.2)
BN_EPS = 1e-5                     # PyTorch BatchNorm1d default eps


# ---- the fused kernel --------------------------------------------------------
def _style_disc_kernel(x_ref, w1_ref, b1_ref, w2_ref, b2_ref,
                       gamma_ref, beta_ref, w3_ref, b3_ref,
                       w4_ref, b4_ref, wl_ref, bl_ref,
                       sig_ref, raw_ref):
    """x_ref: (B, K, IN_F).  w1/w2 are block-diagonal fusions of the 4 groups."""
    x = x_ref[...].astype(jnp.float32)         # cast in-kernel (no wrapper pass)
    feat = jnp.mean(x, axis=1)                 # features.mean(1)[:, :, 0, 0]

    def lrelu(h):                              # LeakyReLU(0.2) == max(h, 0.2*h)
        return jnp.maximum(h, NEG_SLOPE * h)

    # linear1s (grouped) -> LeakyReLU ; block-diag matmul == per-group linears
    h = jnp.dot(feat, w1_ref[...], preferred_element_type=jnp.float32) + b1_ref[...]
    h = lrelu(h)
    # linear2s (grouped) ; concat is implicit in the block-diag layout
    h = jnp.dot(h, w2_ref[...], preferred_element_type=jnp.float32) + b2_ref[...]

    # bn0 (only if batch != 1; batch is static so this is a Python branch).
    # Training-mode BatchNorm1d: biased batch statistics, affine gamma/beta.
    if h.shape[0] != 1:
        mu = jnp.mean(h, axis=0, keepdims=True)
        var = jnp.mean(jnp.square(h - mu), axis=0, keepdims=True)
        h = (h - mu) * jax.lax.rsqrt(var + BN_EPS) * gamma_ref[...] + beta_ref[...]

    h = lrelu(h)
    h = lrelu(jnp.dot(h, w3_ref[...], preferred_element_type=jnp.float32) + b3_ref[...])
    h = lrelu(jnp.dot(h, w4_ref[...], preferred_element_type=jnp.float32) + b4_ref[...])

    raw = jnp.dot(h, wl_ref[...], preferred_element_type=jnp.float32) + bl_ref[...]
    raw_ref[...] = raw.astype(raw_ref.dtype)
    sig_ref[...] = (1.0 / (1.0 + jnp.exp(-raw))).astype(sig_ref.dtype)


# ---- host-side helpers -------------------------------------------------------
def _block_diag(stacked):
    """(G, in_g, out_g) stacked group weights -> (G*in_g, G*out_g) block-diag."""
    g, ig, og = stacked.shape
    bd = jnp.zeros((g * ig, g * og), stacked.dtype)
    for i in range(g):
        bd = bd.at[i * ig:(i + 1) * ig, i * og:(i + 1) * og].set(stacked[i])
    return bd


def init_params(key):
    ks = jax.random.split(key, 12)
    s = 0.08
    g_in1 = IN_F_N // DIVID_N          # 128
    g_o1 = MID_F_N[0] // DIVID_N       # 64
    g_o2 = MID_F_N[1] // DIVID_N       # 32
    f32 = jnp.float32
    return {
        "w1": jax.random.normal(ks[0], (DIVID_N, g_in1, g_o1), f32) * s,
        "b1": jax.random.normal(ks[1], (DIVID_N, g_o1), f32) * 0.01,
        "w2": jax.random.normal(ks[2], (DIVID_N, g_o1, g_o2), f32) * s,
        "b2": jax.random.normal(ks[3], (DIVID_N, g_o2), f32) * 0.01,
        "gamma": 1.0 + 0.1 * jax.random.normal(ks[4], (MID_F_N[1],), f32),
        "beta": 0.1 * jax.random.normal(ks[5], (MID_F_N[1],), f32),
        "w3": jax.random.normal(ks[6], (MID_F_N[1], MID_F_N[2]), f32) * s,
        "b3": jax.random.normal(ks[7], (MID_F_N[2],), f32) * 0.01,
        "w4": jax.random.normal(ks[8], (MID_F_N[2], MID_F_N[3]), f32) * s,
        "b4": jax.random.normal(ks[9], (MID_F_N[3],), f32) * 0.01,
        "wl": jax.random.normal(ks[10], (MID_F_N[3], OUT_F_N), f32) * s,
        "bl": jax.random.normal(ks[11], (OUT_F_N,), f32) * 0.01,
    }


def style_discriminator_forward(features, params):
    """features: (B, K, IN_F_N, 1, 1)  ->  (sigmoid(raw), raw), each (B, OUT_F_N)."""
    B, K = features.shape[0], features.shape[1]
    # spatial is 1x1 in this module; dropping it is a free reshape, no HBM pass
    x = features.reshape(B, K, IN_F_N)

    w1 = _block_diag(params["w1"])                 # (512, 256)
    b1 = params["b1"].reshape(1, -1)               # (1, 256), concat order preserved
    w2 = _block_diag(params["w2"])                 # (256, 128)
    b2 = params["b2"].reshape(1, -1)               # (1, 128)
    gamma = params["gamma"].reshape(1, -1)
    beta = params["beta"].reshape(1, -1)
    w3, b3 = params["w3"], params["b3"].reshape(1, -1)
    w4, b4 = params["w4"], params["b4"].reshape(1, -1)
    wl, bl = params["wl"], params["bl"].reshape(1, -1)
    out_f = wl.shape[1]

    def full2d(shape):
        return pl.BlockSpec(shape, lambda i: (0, 0))

    sig, raw = pl.pallas_call(
        _style_disc_kernel,
        out_shape=(jax.ShapeDtypeStruct((B, out_f), jnp.float32),
                   jax.ShapeDtypeStruct((B, out_f), jnp.float32)),
        grid=(1,),
        in_specs=[
            pl.BlockSpec((B, K, IN_F_N), lambda i: (0, 0, 0)),
            full2d(w1.shape), full2d(b1.shape),
            full2d(w2.shape), full2d(b2.shape),
            full2d(gamma.shape), full2d(beta.shape),
            full2d(w3.shape), full2d(b3.shape),
            full2d(w4.shape), full2d(b4.shape),
            full2d(wl.shape), full2d(bl.shape),
        ],
        out_specs=(full2d((B, out_f)), full2d((B, out_f))),
        compiler_params=pltpu.CompilerParams(
            dimension_semantics=("arbitrary",),
            vmem_limit_bytes=32 * 1024 * 1024,
        ),
    )(x, w1, b1, w2, b2, gamma, beta, w3, b3, w4, b4, wl, bl)
    return sig, raw


# ---- pure-JAX reference (mirrors the PyTorch per-group forward) --------------
def _reference_forward(features, params):
    B, K = features.shape[0], features.shape[1]
    hp = jax.lax.Precision.HIGHEST
    x = features.reshape(B, K, IN_F_N).astype(jnp.float32)
    feat = jnp.mean(x, axis=1)
    chunks = jnp.split(feat, DIVID_N, axis=1)
    hs = []
    for g in range(DIVID_N):
        h = jnp.dot(chunks[g], params["w1"][g], precision=hp) + params["b1"][g]
        h = jnp.maximum(h, NEG_SLOPE * h)
        h = jnp.dot(h, params["w2"][g], precision=hp) + params["b2"][g]
        hs.append(h)
    h = jnp.concatenate(hs, axis=1)
    if B != 1:
        mu = jnp.mean(h, axis=0, keepdims=True)
        var = jnp.mean(jnp.square(h - mu), axis=0, keepdims=True)
        h = (h - mu) * jax.lax.rsqrt(var + BN_EPS) * params["gamma"][None, :] \
            + params["beta"][None, :]
    h = jnp.maximum(h, NEG_SLOPE * h)
    h = jnp.dot(h, params["w3"], precision=hp) + params["b3"]
    h = jnp.maximum(h, NEG_SLOPE * h)
    h = jnp.dot(h, params["w4"], precision=hp) + params["b4"]
    h = jnp.maximum(h, NEG_SLOPE * h)
    raw = jnp.dot(h, params["wl"], precision=hp) + params["bl"]
    return 1.0 / (1.0 + jnp.exp(-raw)), raw


if __name__ == "__main__":
    key = jax.random.PRNGKey(0)
    kx, kp = jax.random.split(key)

    # B=8 fills all 8 sublanes; K=4 "views" averaged by forward; 1x1 spatial.
    B, K = 8, 4
    features = jax.random.normal(kx, (B, K, IN_F_N, 1, 1), jnp.float32) * 0.5
    params = init_params(kp)

    sig, raw = style_discriminator_forward(features, params)
    sig = jax.block_until_ready(sig)
    raw = jax.block_until_ready(raw)

    sig_ref, raw_ref = _reference_forward(features, params)
    assert jnp.allclose(raw, raw_ref, rtol=2e-2, atol=5e-3), (
        float(jnp.max(jnp.abs(raw - raw_ref))))
    assert jnp.allclose(sig, sig_ref, rtol=2e-2, atol=5e-3), (
        float(jnp.max(jnp.abs(sig - sig_ref))))
    assert sig.shape == (B, OUT_F_N) and raw.shape == (B, OUT_F_N)

    print("KERNEL_OK")
</pallas_src>

<mosaic_0001>
module attributes {stable_mosaic.version = 11 : i64} {
  func.func @_style_disc_kernel(%arg0: i32, %arg1: memref<8x4x512xf32, #tpu.memory_space<vmem>>, %arg2: memref<512x256xf32, #tpu.memory_space<vmem>>, %arg3: memref<1x256xf32, #tpu.memory_space<vmem>>, %arg4: memref<256x128xf32, #tpu.memory_space<vmem>>, %arg5: memref<1x128xf32, #tpu.memory_space<vmem>>, %arg6: memref<1x128xf32, #tpu.memory_space<vmem>>, %arg7: memref<1x128xf32, #tpu.memory_space<vmem>>, %arg8: memref<128x64xf32, #tpu.memory_space<vmem>>, %arg9: memref<1x64xf32, #tpu.memory_space<vmem>>, %arg10: memref<64x32xf32, #tpu.memory_space<vmem>>, %arg11: memref<1x32xf32, #tpu.memory_space<vmem>>, %arg12: memref<32x10xf32, #tpu.memory_space<vmem>>, %arg13: memref<1x10xf32, #tpu.memory_space<vmem>>, %arg14: memref<8x10xf32, #tpu.memory_space<vmem>>, %arg15: memref<8x10xf32, #tpu.memory_space<vmem>>) attributes {dimension_semantics = [#tpu.dimension_semantics<arbitrary>], iteration_bounds = array<i64: 1>, scalar_prefetch = 0 : i64, scratch_operands = 0 : i64, tpu.core_type = #tpu.core_type<tc>, window_params = [{pipeline_mode = #tpu.pipeline_mode<synchronous>, transform_indices = @transform_0, window_bounds = array<i64: 8, 4, 512>}, {pipeline_mode = #tpu.pipeline_mode<synchronous>, transform_indices = @transform_1, window_bounds = array<i64: 512, 256>}, {pipeline_mode = #tpu.pipeline_mode<synchronous>, transform_indices = @transform_2, window_bounds = array<i64: 1, 256>}, {pipeline_mode = #tpu.pipeline_mode<synchronous>, transform_indices = @transform_3, window_bounds = array<i64: 256, 128>}, {pipeline_mode = #tpu.pipeline_mode<synchronous>, transform_indices = @transform_4, window_bounds = array<i64: 1, 128>}, {pipeline_mode = #tpu.pipeline_mode<synchronous>, transform_indices = @transform_5, window_bounds = array<i64: 1, 128>}, {pipeline_mode = #tpu.pipeline_mode<synchronous>, transform_indices = @transform_6, window_bounds = array<i64: 1, 128>}, {pipeline_mode = #tpu.pipeline_mode<synchronous>, transform_indices = @transform_7, window_bounds = array<i64: 128, 64>}, {pipeline_mode = #tpu.pipeline_mode<synchronous>, transform_indices = @transform_8, window_bounds = array<i64: 1, 64>}, {pipeline_mode = #tpu.pipeline_mode<synchronous>, transform_indices = @transform_9, window_bounds = array<i64: 64, 32>}, {pipeline_mode = #tpu.pipeline_mode<synchronous>, transform_indices = @transform_10, window_bounds = array<i64: 1, 32>}, {pipeline_mode = #tpu.pipeline_mode<synchronous>, transform_indices = @transform_11, window_bounds = array<i64: 32, 10>}, {pipeline_mode = #tpu.pipeline_mode<synchronous>, transform_indices = @transform_12, window_bounds = array<i64: 1, 10>}, {pipeline_mode = #tpu.pipeline_mode<synchronous>, transform_indices = @transform_13, window_bounds = array<i64: 8, 10>}, {pipeline_mode = #tpu.pipeline_mode<synchronous>, transform_indices = @transform_14, window_bounds = array<i64: 8, 10>}]} {
    %c0 = arith.constant 0 : index
    %c0_0 = arith.constant 0 : index
    %c0_1 = arith.constant 0 : index
    %0 = vector.load %arg1[%c0, %c0_0, %c0_1] : memref<8x4x512xf32, #tpu.memory_space<vmem>>, vector<8x4x512xf32>
    %cst = arith.constant dense<0.000000e+00> : vector<8x512xf32>
    %1 = vector.multi_reduction <add>, %0, %cst [1] : vector<8x4x512xf32> to vector<8x512xf32>
    %cst_2 = arith.constant 4.000000e+00 : f32
    %2 = vector.broadcast %cst_2 : f32 to vector<8x512xf32>
    %3 = arith.divf %1, %2 : vector<8x512xf32>
    %c0_3 = arith.constant 0 : index
    %c0_4 = arith.constant 0 : index
    %4 = vector.load %arg2[%c0_3, %c0_4] : memref<512x256xf32, #tpu.memory_space<vmem>>, vector<512x256xf32>
    %cst_5 = arith.constant dense<0.000000e+00> : vector<8x256xf32>
    %5 = tpu.matmul %3, %4, %cst_5 {dimension_numbers = #tpu.dot_dimension_numbers<[1], [0], [0], [1], [0, 0, 1, 1], [], []>} : vector<8x512xf32>, vector<512x256xf32>, vector<8x256xf32> -> vector<8x256xf32>
    %c0_6 = arith.constant 0 : index
    %c0_7 = arith.constant 0 : index
    %6 = vector.load %arg3[%c0_6, %c0_7] : memref<1x256xf32, #tpu.memory_space<vmem>>, vector<1x256xf32>
    %7 = vector.broadcast %6 : vector<1x256xf32> to vector<8x256xf32>
    %8 = arith.addf %5, %7 : vector<8x256xf32>
    %cst_8 = arith.constant 2.000000e-01 : f32
    %9 = vector.broadcast %cst_8 : f32 to vector<8x256xf32>
    %10 = arith.mulf %9, %8 : vector<8x256xf32>
    %11 = arith.maximumf %8, %10 : vector<8x256xf32>
    %c0_9 = arith.constant 0 : index
    %c0_10 = arith.constant 0 : index
    %12 = vector.load %arg4[%c0_9, %c0_10] : memref<256x128xf32, #tpu.memory_space<vmem>>, vector<256x128xf32>
    %cst_11 = arith.constant dense<0.000000e+00> : vector<8x128xf32>
    %13 = tpu.matmul %11, %12, %cst_11 {dimension_numbers = #tpu.dot_dimension_numbers<[1], [0], [0], [1], [0, 0, 1, 1], [], []>} : vector<8x256xf32>, vector<256x128xf32>, vector<8x128xf32> -> vector<8x128xf32>
    %c0_12 = arith.constant 0 : index
    %c0_13 = arith.constant 0 : index
    %14 = vector.load %arg5[%c0_12, %c0_13] : memref<1x128xf32, #tpu.memory_space<vmem>>, vector<1x128xf32>
    %15 = vector.broadcast %14 : vector<1x128xf32> to vector<8x128xf32>
    %16 = arith.addf %13, %15 : vector<8x128xf32>
    %cst_14 = arith.constant dense<0.000000e+00> : vector<128xf32>
    %17 = vector.multi_reduction <add>, %16, %cst_14 [0] : vector<8x128xf32> to vector<128xf32>
    %18 = vector.shape_cast %17 : vector<128xf32> to vector<1x128xf32>
    %cst_15 = arith.constant 8.000000e+00 : f32
    %19 = vector.broadcast %cst_15 : f32 to vector<1x128xf32>
    %20 = arith.divf %18, %19 : vector<1x128xf32>
    %21 = vector.broadcast %20 : vector<1x128xf32> to vector<8x128xf32>
    %22 = arith.subf %16, %21 : vector<8x128xf32>
    %23 = arith.mulf %22, %22 : vector<8x128xf32>
    %cst_16 = arith.constant dense<0.000000e+00> : vector<128xf32>
    %24 = vector.multi_reduction <add>, %23, %cst_16 [0] : vector<8x128xf32> to vector<128xf32>
    %25 = vector.shape_cast %24 : vector<128xf32> to vector<1x128xf32>
    %cst_17 = arith.constant 8.000000e+00 : f32
    %26 = vector.broadcast %cst_17 : f32 to vector<1x128xf32>
    %27 = arith.divf %25, %26 : vector<1x128xf32>
    %28 = vector.broadcast %20 : vector<1x128xf32> to vector<8x128xf32>
    %29 = arith.subf %16, %28 : vector<8x128xf32>
    %cst_18 = arith.constant 9.99999974E-6 : f32
    %30 = vector.broadcast %cst_18 : f32 to vector<1x128xf32>
    %31 = arith.addf %27, %30 : vector<1x128xf32>
    %32 = math.rsqrt %31 : vector<1x128xf32>
    %33 = vector.broadcast %32 : vector<1x128xf32> to vector<8x128xf32>
    %34 = arith.mulf %29, %33 : vector<8x128xf32>
    %c0_19 = arith.constant 0 : index
    %c0_20 = arith.constant 0 : index
    %35 = vector.load %arg6[%c0_19, %c0_20] : memref<1x128xf32, #tpu.memory_space<vmem>>, vector<1x128xf32>
    %36 = vector.broadcast %35 : vector<1x128xf32> to vector<8x128xf32>
    %37 = arith.mulf %34, %36 : vector<8x128xf32>
    %c0_21 = arith.constant 0 : index
    %c0_22 = arith.constant 0 : index
    %38 = vector.load %arg7[%c0_21, %c0_22] : memref<1x128xf32, #tpu.memory_space<vmem>>, vector<1x128xf32>
    %39 = vector.broadcast %38 : vector<1x128xf32> to vector<8x128xf32>
    %40 = arith.addf %37, %39 : vector<8x128xf32>
    %cst_23 = arith.constant 2.000000e-01 : f32
    %41 = vector.broadcast %cst_23 : f32 to vector<8x128xf32>
    %42 = arith.mulf %41, %40 : vector<8x128xf32>
    %43 = arith.maximumf %40, %42 : vector<8x128xf32>
    %c0_24 = arith.constant 0 : index
    %c0_25 = arith.constant 0 : index
    %44 = vector.load %arg8[%c0_24, %c0_25] : memref<128x64xf32, #tpu.memory_space<vmem>>, vector<128x64xf32>
    %cst_26 = arith.constant dense<0.000000e+00> : vector<8x64xf32>
    %45 = tpu.matmul %43, %44, %cst_26 {dimension_numbers = #tpu.dot_dimension_numbers<[1], [0], [0], [1], [0, 0, 1, 1], [], []>} : vector<8x128xf32>, vector<128x64xf32>, vector<8x64xf32> -> vector<8x64xf32>
    %c0_27 = arith.constant 0 : index
    %c0_28 = arith.constant 0 : index
    %46 = vector.load %arg9[%c0_27, %c0_28] : memref<1x64xf32, #tpu.memory_space<vmem>>, vector<1x64xf32>
    %47 = vector.broadcast %46 : vector<1x64xf32> to vector<8x64xf32>
    %48 = arith.addf %45, %47 : vector<8x64xf32>
    %cst_29 = arith.constant 2.000000e-01 : f32
    %49 = vector.broadcast %cst_29 : f32 to vector<8x64xf32>
    %50 = arith.mulf %49, %48 : vector<8x64xf32>
    %51 = arith.maximumf %48, %50 : vector<8x64xf32>
    %c0_30 = arith.constant 0 : index
    %c0_31 = arith.constant 0 : index
    %52 = vector.load %arg10[%c0_30, %c0_31] : memref<64x32xf32, #tpu.memory_space<vmem>>, vector<64x32xf32>
    %cst_32 = arith.constant dense<0.000000e+00> : vector<8x32xf32>
    %53 = tpu.matmul %51, %52, %cst_32 {dimension_numbers = #tpu.dot_dimension_numbers<[1], [0], [0], [1], [0, 0, 1, 1], [], []>} : vector<8x64xf32>, vector<64x32xf32>, vector<8x32xf32> -> vector<8x32xf32>
    %c0_33 = arith.constant 0 : index
    %c0_34 = arith.constant 0 : index
    %54 = vector.load %arg11[%c0_33, %c0_34] : memref<1x32xf32, #tpu.memory_space<vmem>>, vector<1x32xf32>
    %55 = vector.broadcast %54 : vector<1x32xf32> to vector<8x32xf32>
    %56 = arith.addf %53, %55 : vector<8x32xf32>
    %cst_35 = arith.constant 2.000000e-01 : f32
    %57 = vector.broadcast %cst_35 : f32 to vector<8x32xf32>
    %58 = arith.mulf %57, %56 : vector<8x32xf32>
    %59 = arith.maximumf %56, %58 : vector<8x32xf32>
    %c0_36 = arith.constant 0 : index
    %c0_37 = arith.constant 0 : index
    %60 = vector.load %arg12[%c0_36, %c0_37] : memref<32x10xf32, #tpu.memory_space<vmem>>, vector<32x10xf32>
    %cst_38 = arith.constant dense<0.000000e+00> : vector<8x10xf32>
    %61 = tpu.matmul %59, %60, %cst_38 {dimension_numbers = #tpu.dot_dimension_numbers<[1], [0], [0], [1], [0, 0, 1, 1], [], []>} : vector<8x32xf32>, vector<32x10xf32>, vector<8x10xf32> -> vector<8x10xf32>
    %c0_39 = arith.constant 0 : index
    %c0_40 = arith.constant 0 : index
    %62 = vector.load %arg13[%c0_39, %c0_40] : memref<1x10xf32, #tpu.memory_space<vmem>>, vector<1x10xf32>
    %63 = vector.broadcast %62 : vector<1x10xf32> to vector<8x10xf32>
    %64 = arith.addf %61, %63 : vector<8x10xf32>
    %c0_41 = arith.constant 0 : index
    %c0_42 = arith.constant 0 : index
    %65 = vector.load %arg15[%c0_41, %c0_42] : memref<8x10xf32, #tpu.memory_space<vmem>>, vector<8x10xf32>
    tpu.vector_store %arg15[%c0_41, %c0_42], %64 {strides = array<i32>} : memref<8x10xf32, #tpu.memory_space<vmem>>, vector<8x10xf32>,
    %cst_43 = arith.constant 0.000000e+00 : f32
    %66 = vector.broadcast %cst_43 : f32 to vector<8x10xf32>
    %67 = arith.subf %66, %64 : vector<8x10xf32>
    %68 = math.exp %67 : vector<8x10xf32>
    %cst_44 = arith.constant 1.000000e+00 : f32
    %69 = vector.broadcast %cst_44 : f32 to vector<8x10xf32>
    %70 = arith.addf %69, %68 : vector<8x10xf32>
    %cst_45 = arith.constant 1.000000e+00 : f32
    %71 = vector.broadcast %cst_45 : f32 to vector<8x10xf32>
    %72 = arith.divf %71, %70 : vector<8x10xf32>
    %c0_46 = arith.constant 0 : index
    %c0_47 = arith.constant 0 : index
    %73 = vector.load %arg14[%c0_46, %c0_47] : memref<8x10xf32, #tpu.memory_space<vmem>>, vector<8x10xf32>
    tpu.vector_store %arg14[%c0_46, %c0_47], %72 {strides = array<i32>} : memref<8x10xf32, #tpu.memory_space<vmem>>, vector<8x10xf32>,
    return
  }
  func.func @transform_0(%arg0: i32) -> (i32, i32, i32) {
    %c0_i32 = arith.constant 0 : i32
    %c0_i32_0 = arith.constant 0 : i32
    %c0_i32_1 = arith.constant 0 : i32
    %c0_i32_2 = arith.constant 0 : i32
    return %c0_i32, %c0_i32_0, %c0_i32_1 : i32, i32, i32
  }
  func.func @transform_1(%arg0: i32) -> (i32, i32) {
    %c0_i32 = arith.constant 0 : i32
    %c0_i32_0 = arith.constant 0 : i32
    %c0_i32_1 = arith.constant 0 : i32
    return %c0_i32, %c0_i32_0 : i32, i32
  }
  func.func @transform_2(%arg0: i32) -> (i32, i32) {
    %c0_i32 = arith.constant 0 : i32
    %c0_i32_0 = arith.constant 0 : i32
    %c0_i32_1 = arith.constant 0 : i32
    return %c0_i32, %c0_i32_0 : i32, i32
  }
  func.func @transform_3(%arg0: i32) -> (i32, i32) {
    %c0_i32 = arith.constant 0 : i32
    %c0_i32_0 = arith.constant 0 : i32
    %c0_i32_1 = arith.constant 0 : i32
    return %c0_i32, %c0_i32_0 : i32, i32
  }
  func.func @transform_4(%arg0: i32) -> (i32, i32) {
    %c0_i32 = arith.constant 0 : i32
    %c0_i32_0 = arith.constant 0 : i32
    %c0_i32_1 = arith.constant 0 : i32
    return %c0_i32, %c0_i32_0 : i32, i32
  }
  func.func @transform_5(%arg0: i32) -> (i32, i32) {
    %c0_i32 = arith.constant 0 : i32
    %c0_i32_0 = arith.constant 0 : i32
    %c0_i32_1 = arith.constant 0 : i32
    return %c0_i32, %c0_i32_0 : i32, i32
  }
  func.func @transform_6(%arg0: i32) -> (i32, i32) {
    %c0_i32 = arith.constant 0 : i32
    %c0_i32_0 = arith.constant 0 : i32
    %c0_i32_1 = arith.constant 0 : i32
    return %c0_i32, %c0_i32_0 : i32, i32
  }
  func.func @transform_7(%arg0: i32) -> (i32, i32) {
    %c0_i32 = arith.constant 0 : i32
    %c0_i32_0 = arith.constant 0 : i32
    %c0_i32_1 = arith.constant 0 : i32
    return %c0_i32, %c0_i32_0 : i32, i32
  }
  func.func @transform_8(%arg0: i32) -> (i32, i32) {
    %c0_i32 = arith.constant 0 : i32
    %c0_i32_0 = arith.constant 0 : i32
    %c0_i32_1 = arith.constant 0 : i32
    return %c0_i32, %c0_i32_0 : i32, i32
  }
  func.func @transform_9(%arg0: i32) -> (i32, i32) {
    %c0_i32 = arith.constant 0 : i32
    %c0_i32_0 = arith.constant 0 : i32
    %c0_i32_1 = arith.constant 0 : i32
    return %c0_i32, %c0_i32_0 : i32, i32
  }
  func.func @transform_10(%arg0: i32) -> (i32, i32) {
    %c0_i32 = arith.constant 0 : i32
    %c0_i32_0 = arith.constant 0 : i32
    %c0_i32_1 = arith.constant 0 : i32
    return %c0_i32, %c0_i32_0 : i32, i32
  }
  func.func @transform_11(%arg0: i32) -> (i32, i32) {
    %c0_i32 = arith.constant 0 : i32
    %c0_i32_0 = arith.constant 0 : i32
    %c0_i32_1 = arith.constant 0 : i32
    return %c0_i32, %c0_i32_0 : i32, i32
  }
  func.func @transform_12(%arg0: i32) -> (i32, i32) {
    %c0_i32 = arith.constant 0 : i32
    %c0_i32_0 = arith.constant 0 : i32
    %c0_i32_1 = arith.constant 0 : i32
    return %c0_i32, %c0_i32_0 : i32, i32
  }
  func.func @transform_13(%arg0: i32) -> (i32, i32) {
    %c0_i32 = arith.constant 0 : i32
    %c0_i32_0 = arith.constant 0 : i32
    %c0_i32_1 = arith.constant 0 : i32
    return %c0_i32, %c0_i32_0 : i32, i32
  }
  func.func @transform_14(%arg0: i32) -> (i32, i32) {
    %c0_i32 = arith.constant 0 : i32
    %c0_i32_0 = arith.constant 0 : i32
    %c0_i32_1 = arith.constant 0 : i32
    return %c0_i32, %c0_i32_0 : i32, i32
  }
}

</mosaic_0001>

<llo_original>
// kernel: tpu_custom_call.1
$region0: #{tpu_custom_call.1}
  #allocation0 [shape = 'u32[]', space=smem, size = 0x4, offset = 0x4, fixed_abs, tag = 'smem constant byte address 0x4 - core index']
  #allocation1 [shape = 'u32[144,128]{1,0:T(1,128)}', space=vmem, size = 0x12000, scoped, tag = 'internal scratch']
  %s0 = inlined_call_operand.hbm [shape: f32[8,4,512], index: 0, kind: input, shape index: {}]
  %s1 = inlined_call_operand.hbm [shape: f32[512,256], index: 1, kind: input, shape index: {}]
  %s2 = inlined_call_operand.vmem [shape: f32[1,256], index: 2, kind: input, shape index: {}]
  %s3 = inlined_call_operand.vmem [shape: f32[256,128], index: 3, kind: input, shape index: {}]
  %s4 = inlined_call_operand.hbm [shape: f32[1,128], index: 4, kind: input, shape index: {}]
  %s5 = inlined_call_operand.hbm [shape: f32[1,128], index: 5, kind: input, shape index: {}]
  %s6 = inlined_call_operand.hbm [shape: f32[1,128], index: 6, kind: input, shape index: {}]
  %s7 = inlined_call_operand.vmem [shape: f32[128,64], index: 7, kind: input, shape index: {}]
  %s8 = inlined_call_operand.hbm [shape: f32[1,64], index: 8, kind: input, shape index: {}]
  %s9 = inlined_call_operand.vmem [shape: f32[64,32], index: 9, kind: input, shape index: {}]
  %s10 = inlined_call_operand.vmem [shape: f32[1,32], index: 10, kind: input, shape index: {}]
  %s11 = inlined_call_operand.vmem [shape: f32[32,10], index: 11, kind: input, shape index: {}]
  %s12 = inlined_call_operand.vmem [shape: f32[1,10], index: 12, kind: input, shape index: {}]
  %s13 = inlined_call_operand.hbm [shape: f32[8,10], index: 13, kind: output, shape index: {0}]
  %s14 = inlined_call_operand.hbm [shape: f32[8,10], index: 14, kind: output, shape index: {1}]
  %15 = xla_tuple %s13, %s14
  %s16 = sld [smem:[#allocation0]]
  $region94: #{tpu_custom_call.1} parent=0
    _
  %s18 = ssub.s32 1, %s16
  %s19 = scalar_select 0, %s18, %s16
  $region1: #{tpu_custom_call.1} parent=0
    #allocation2 [shape = 'u8[65536]{0}', space=vmem, size = 0x10000, scoped, tag = 'input window, operand 0, single buffered']
    #allocation3 [shape = 's32[1]{0}', space=sflag, size = 0x4, scoped, tag = 'scoped memory for tpu_custom_call.1']
    #allocation4 [shape = 's32[1]{0}', space=sflag, size = 0x4, scoped, tag = 'scoped memory for tpu_custom_call.1']
    #allocation5 [shape = 'u8[524288]{0}', space=vmem, size = 0x80000, scoped, tag = 'input window, operand 1, single buffered']
    #allocation6 [shape = 's32[1]{0}', space=sflag, size = 0x4, scoped, tag = 'scoped memory for tpu_custom_call.1']
    #allocation7 [shape = 'u8[512]{0}', space=vmem, size = 0x400, scoped, tag = 'input window, operand 4, single buffered']
    #allocation8 [shape = 'u8[512]{0}', space=vmem, size = 0x400, scoped, tag = 'input window, operand 5, single buffered']
    #allocation9 [shape = 's32[1]{0}', space=sflag, size = 0x4, scoped, tag = 'scoped memory for tpu_custom_call.1']
    #allocation10 [shape = 'u8[512]{0}', space=vmem, size = 0x400, scoped, tag = 'input window, operand 6, single buffered']
    #allocation11 [shape = 'u8[512]{0}', space=vmem, size = 0x400, scoped, tag = 'input window, operand 8, single buffered']
    #allocation12 [shape = 's32[1]{0}', space=sflag, size = 0x4, scoped, tag = 'scoped memory for tpu_custom_call.1']
    #allocation13 [shape = 'u8[4096]{0}', space=vmem, size = 0x1000, scoped, tag = 'output window, operand 0, single buffered']
    #allocation14 [shape = 'u8[4096]{0}', space=vmem, size = 0x1000, scoped, tag = 'output window, operand 1, single buffered']
    #allocation15 [shape = 's32[1]{0}', space=sflag, size = 0x4, scoped, tag = 'scoped memory for tpu_custom_call.1']
    %20 = vsyncpa [#allocation3], 0
    %21 = vsyncpa [#allocation6], 0
    %22 = vsyncpa [#allocation9], 0
    %23 = vsyncpa [#allocation12], 0
    %24 = vsyncpa [#allocation4], 0
    %25 = vsyncpa [#allocation15], 0
    // Predicated region
    $region2: #{tpu_custom_call.1} parent=1 // pred_check
      _
    $region3: #{tpu_custom_call.1} parent=1 // pred_check_branch
      %27 = sbr.rel (0) target = $region5
    $region4: #{tpu_custom_call.1} parent=1 // pred_region
      %s29 = ssub.s32 2048, 2048
      %30 = vsyncadd [#allocation3], %s29
      %s31 = sshll.u32 [#allocation2], 4
      %s32 = int_to_ptr.vmem [resolvable:$true] %s31
      %37 = dma.hbm_to_vmem [thread:$0]  %s0, 2048, %s32, [#allocation3], 256, 256, 16
    $region5: #{tpu_custom_call.1} parent=1 // pred_fallthru
      _
    // Predicated region
    $region6: #{tpu_custom_call.1} parent=1 // pred_check
      _
    $region7: #{tpu_custom_call.1} parent=1 // pred_check_branch
      %39 = sbr.rel (0) target = $region9
    $region8: #{tpu_custom_call.1} parent=1 // pred_region
      %s41 = ssub.s32 16384, 16384
      %42 = vsyncadd [#allocation6], %s41
      %s43 = sshll.u32 [#allocation5], 4
      %s44 = int_to_ptr.vmem [resolvable:$true] %s43
      %49 = dma.hbm_to_vmem [thread:$0]  %s1, 16384, %s44, [#allocation6], 256, 256, 16
    $region9: #{tpu_custom_call.1} parent=1 // pred_fallthru
      _
    // Predicated region
    $region10: #{tpu_custom_call.1} parent=1 // pred_check
      _
    $region11: #{tpu_custom_call.1} parent=1 // pred_check_branch
      %51 = sbr.rel (0) target = $region13
    $region12: #{tpu_custom_call.1} parent=1 // pred_region
      _
    $region13: #{tpu_custom_call.1} parent=1 // pred_fallthru
      _
    // Predicated region
    $region14: #{tpu_custom_call.1} parent=1 // pred_check
      _
    $region15: #{tpu_custom_call.1} parent=1 // pred_check_branch
      %53 = sbr.rel (0) target = $region17
    $region16: #{tpu_custom_call.1} parent=1 // pred_region
      _
    $region17: #{tpu_custom_call.1} parent=1 // pred_fallthru
      _
    // Predicated region
    $region18: #{tpu_custom_call.1} parent=1 // pred_check
      _
    $region19: #{tpu_custom_call.1} parent=1 // pred_check_branch
      %55 = sbr.rel (0) target = $region21
    $region20: #{tpu_custom_call.1} parent=1 // pred_region
      %s57 = ssub.s32 16, 16
      %58 = vsyncadd [#allocation6], %s57
      %s60 = sshll.u32 [#allocation7], 4
      %s61 = int_to_ptr.vmem [resolvable:$true] %s60
      %63 = dma.hbm_to_vmem [thread:$0]  %s4, 16, %s61, [#allocation6]
    $region21: #{tpu_custom_call.1} parent=1 // pred_fallthru
      _
    // Predicated region
    $region22: #{tpu_custom_call.1} parent=1 // pred_check
      _
    $region23: #{tpu_custom_call.1} parent=1 // pred_check_branch
      %65 = sbr.rel (0) target = $region25
    $region24: #{tpu_custom_call.1} parent=1 // pred_region
      %s67 = ssub.s32 16, 16
      %68 = vsyncadd [#allocation9], %s67
      %s70 = sshll.u32 [#allocation8], 4
      %s71 = int_to_ptr.vmem [resolvable:$true] %s70
      %73 = dma.hbm_to_vmem [thread:$0]  %s5, 16, %s71, [#allocation9]
    $region25: #{tpu_custom_call.1} parent=1 // pred_fallthru
      _
    // Predicated region
    $region26: #{tpu_custom_call.1} parent=1 // pred_check
      _
    $region27: #{tpu_custom_call.1} parent=1 // pred_check_branch
      %75 = sbr.rel (0) target = $region29
    $region28: #{tpu_custom_call.1} parent=1 // pred_region
      %s77 = ssub.s32 16, 16
      %78 = vsyncadd [#allocation9], %s77
      %s80 = sshll.u32 [#allocation10], 4
      %s81 = int_to_ptr.vmem [resolvable:$true] %s80
      %83 = dma.hbm_to_vmem [thread:$0]  %s6, 16, %s81, [#allocation9]
    $region29: #{tpu_custom_call.1} parent=1 // pred_fallthru
      _
    // Predicated region
    $region30: #{tpu_custom_call.1} parent=1 // pred_check
      _
    $region31: #{tpu_custom_call.1} parent=1 // pred_check_branch
      %85 = sbr.rel (0) target = $region33
    $region32: #{tpu_custom_call.1} parent=1 // pred_region
      _
    $region33: #{tpu_custom_call.1} parent=1 // pred_fallthru
      _
    // Predicated region
    $region34: #{tpu_custom_call.1} parent=1 // pred_check
      _
    $region35: #{tpu_custom_call.1} parent=1 // pred_check_branch
      %87 = sbr.rel (0) target = $region37
    $region36: #{tpu_custom_call.1} parent=1 // pred_region
      %s89 = ssub.s32 16, 16
      %90 = vsyncadd [#allocation12], %s89
      %s92 = sshll.u32 [#allocation11], 4
      %s93 = int_to_ptr.vmem [resolvable:$true] %s92
      %95 = dma.hbm_to_vmem [thread:$0]  %s8, 16, %s93, [#allocation12]
    $region37: #{tpu_custom_call.1} parent=1 // pred_fallthru
      _
    // Predicated region
    $region38: #{tpu_custom_call.1} parent=1 // pred_check
      _
    $region39: #{tpu_custom_call.1} parent=1 // pred_check_branch
      %97 = sbr.rel (0) target = $region41
    $region40: #{tpu_custom_call.1} parent=1 // pred_region
      _
    $region41: #{tpu_custom_call.1} parent=1 // pred_fallthru
      _
    // Predicated region
    $region42: #{tpu_custom_call.1} parent=1 // pred_check
      _
    $region43: #{tpu_custom_call.1} parent=1 // pred_check_branch
      %99 = sbr.rel (0) target = $region45
    $region44: #{tpu_custom_call.1} parent=1 // pred_region
      _
    $region45: #{tpu_custom_call.1} parent=1 // pred_fallthru
      _
    // Predicated region
    $region46: #{tpu_custom_call.1} parent=1 // pred_check
      _
    $region47: #{tpu_custom_call.1} parent=1 // pred_check_branch
      %101 = sbr.rel (0) target = $region49
    $region48: #{tpu_custom_call.1} parent=1 // pred_region
      _
    $region49: #{tpu_custom_call.1} parent=1 // pred_fallthru
      _
    // Predicated region
    $region50: #{tpu_custom_call.1} parent=1 // pred_check
      _
    $region51: #{tpu_custom_call.1} parent=1 // pred_check_branch
      %103 = sbr.rel (0) target = $region53
    $region52: #{tpu_custom_call.1} parent=1 // pred_region
      _
    $region53: #{tpu_custom_call.1} parent=1 // pred_fallthru
      _
    // Predicated region
    $region54: #{tpu_custom_call.1} parent=1 // pred_check
      _
    $region55: #{tpu_custom_call.1} parent=1 // pred_check_branch
      %105 = sbr.rel (0) target = $region57
    $region56: #{tpu_custom_call.1} parent=1 // pred_region
      %106 = dma.done [#allocation3], 2048
    $region57: #{tpu_custom_call.1} parent=1 // pred_fallthru
      _
    // Predicated region
    $region58: #{tpu_custom_call.1} parent=1 // pred_check
      _
    $region59: #{tpu_custom_call.1} parent=1 // pred_check_branch
      %108 = sbr.rel (0) target = $region61
    $region60: #{tpu_custom_call.1} parent=1 // pred_region
      %109 = dma.done [#allocation6], 16384
    $region61: #{tpu_custom_call.1} parent=1 // pred_fallthru
      _
    // Predicated region
    $region62: #{tpu_custom_call.1} parent=1 // pred_check
      _
    $region63: #{tpu_custom_call.1} parent=1 // pred_check_branch
      %111 = sbr.rel (0) target = $region65
    $region64: #{tpu_custom_call.1} parent=1 // pred_region
      %112 = dma.done [#allocation6], 16
    $region65: #{tpu_custom_call.1} parent=1 // pred_fallthru
      _
    // Predicated region
    $region66: #{tpu_custom_call.1} parent=1 // pred_check
      _
    $region67: #{tpu_custom_call.1} parent=1 // pred_check_branch
      %114 = sbr.rel (0) target = $region69
    $region68: #{tpu_custom_call.1} parent=1 // pred_region
      %115 = dma.done [#allocation9], 16
    $region69: #{tpu_custom_call.1} parent=1 // pred_fallthru
      _
    // Predicated region
    $region70: #{tpu_custom_call.1} parent=1 // pred_check
      _
    $region71: #{tpu_custom_call.1} parent=1 // pred_check_branch
      %117 = sbr.rel (0) target = $region73
    $region72: #{tpu_custom_call.1} parent=1 // pred_region
      %118 = dma.done [#allocation9], 16
    $region73: #{tpu_custom_call.1} parent=1 // pred_fallthru
      _
    // Predicated region
    $region74: #{tpu_custom_call.1} parent=1 // pred_check
      _
    $region75: #{tpu_custom_call.1} parent=1 // pred_check_branch
      %120 = sbr.rel (0) target = $region77
    $region76: #{tpu_custom_call.1} parent=1 // pred_region
      %121 = dma.done [#allocation12], 16
    $region77: #{tpu_custom_call.1} parent=1 // pred_fallthru
      _
    %v122 = vld [vmem:[#allocation2] sm:$0xff]
    %v123 = vld [vmem:[#allocation2 + $0x8] sm:$0xff]
    %v124 = vld [vmem:[#allocation2 + $0x10] sm:$0xff]
    %v125 = vld [vmem:[#allocation2 + $0x18] sm:$0xff]
    %v126 = vld [vmem:[#allocation2 + $0x20] sm:$0xff]
    %v127 = vld [vmem:[#allocation2 + $0x28] sm:$0xff]
    %v128 = vld [vmem:[#allocation2 + $0x30] sm:$0xff]
    %v129 = vld [vmem:[#allocation2 + $0x38] sm:$0xff]
    %v130 = vld [vmem:[#allocation2 + $0x40] sm:$0xff]
    %v131 = vld [vmem:[#allocation2 + $0x48] sm:$0xff]
    %v132 = vld [vmem:[#allocation2 + $0x50] sm:$0xff]
    %v133 = vld [vmem:[#allocation2 + $0x58] sm:$0xff]
    %v134 = vld [vmem:[#allocation2 + $0x60] sm:$0xff]
    %v135 = vld [vmem:[#allocation2 + $0x68] sm:$0xff]
    %v136 = vld [vmem:[#allocation2 + $0x70] sm:$0xff]
    %v137 = vld [vmem:[#allocation2 + $0x78] sm:$0xff]
    %v154 = vcombine.high %v122, %v122
    %v155 = vcombine.high %v123, %v123
    %v156 = vcombine.high %v124, %v124
    %v157 = vcombine.high %v125, %v125
    %v158 = vcombine.high %v126, %v126
    %v159 = vcombine.high %v127, %v127
    %v160 = vcombine.high %v128, %v128
    %v161 = vcombine.high %v129, %v129
    %v162 = vcombine.high %v130, %v130
    %v163 = vcombine.high %v131, %v131
    %v164 = vcombine.high %v132, %v132
    %v165 = vcombine.high %v133, %v133
    %v166 = vcombine.high %v134, %v134
    %v167 = vcombine.high %v135, %v135
    %v168 = vcombine.high %v136, %v136
    %v169 = vcombine.high %v137, %v137
    %vm186 = vcmask 1043456
    %v187 = vsel %vm186, %v122, 0.0
    %v188 = vrot.slane %v187, 4
    %v189 = vadd.f32 %v187, %v188
    %v190 = vrot.slane %v189, 2
    %v191 = vadd.f32 %v189, %v190
    %v192 = vrot.slane %v191, 1
    %v193 = vadd.f32 %v191, %v192
    %v194 = vsel %vm186, %v154, 0.0
    %v195 = vrot.slane %v194, 4
    %v196 = vadd.f32 %v194, %v195
    %v197 = vrot.slane %v196, 2
    %v198 = vadd.f32 %v196, %v197
    %v199 = vrot.slane %v198, 1
    %v200 = vadd.f32 %v198, %v199
    %v201 = vsel %vm186, %v123, 0.0
    %v202 = vrot.slane %v201, 4
    %v203 = vadd.f32 %v201, %v202
    %v204 = vrot.slane %v203, 2
    %v205 = vadd.f32 %v203, %v204
    %v206 = vrot.slane %v205, 1
    %v207 = vadd.f32 %v205, %v206
    %v208 = vsel %vm186, %v155, 0.0
    %v209 = vrot.slane %v208, 4
    %v210 = vadd.f32 %v208, %v209
    %v211 = vrot.slane %v210, 2
    %v212 = vadd.f32 %v210, %v211
    %v213 = vrot.slane %v212, 1
    %v214 = vadd.f32 %v212, %v213
    %v215 = vsel %vm186, %v124, 0.0
    %v216 = vrot.slane %v215, 4
    %v217 = vadd.f32 %v215, %v216
    %v218 = vrot.slane %v217, 2
    %v219 = vadd.f32 %v217, %v218
    %v220 = vrot.slane %v219, 1
    %v221 = vadd.f32 %v219, %v220
    %v222 = vsel %vm186, %v156, 0.0
    %v223 = vrot.slane %v222, 4
    %v224 = vadd.f32 %v222, %v223
    %v225 = vrot.slane %v224, 2
    %v226 = vadd.f32 %v224, %v225
    %v227 = vrot.slane %v226, 1
    %v228 = vadd.f32 %v226, %v227
    %v229 = vsel %vm186, %v125, 0.0
    %v230 = vrot.slane %v229, 4
    %v231 = vadd.f32 %v229, %v230
    %v232 = vrot.slane %v231, 2
    %v233 = vadd.f32 %v231, %v232
    %v234 = vrot.slane %v233, 1
    %v235 = vadd.f32 %v233, %v234
    %v236 = vsel %vm186, %v157, 0.0
    %v237 = vrot.slane %v236, 4
    %v238 = vadd.f32 %v236, %v237
    %v239 = vrot.slane %v238, 2
    %v240 = vadd.f32 %v238, %v239
    %v241 = vrot.slane %v240, 1
    %v242 = vadd.f32 %v240, %v241
    %v243 = vsel %vm186, %v126, 0.0
    %v244 = vrot.slane %v243, 4
    %v245 = vadd.f32 %v243, %v244
    %v246 = vrot.slane %v245, 2
    %v247 = vadd.f32 %v245, %v246
    %v248 = vrot.slane %v247, 1
    %v249 = vadd.f32 %v247, %v248
    %v250 = vsel %vm186, %v158, 0.0
    %v251 = vrot.slane %v250, 4
    %v252 = vadd.f32 %v250, %v251
    %v253 = vrot.slane %v252, 2
    %v254 = vadd.f32 %v252, %v253
    %v255 = vrot.slane %v254, 1
    %v256 = vadd.f32 %v254, %v255
    %v257 = vsel %vm186, %v127, 0.0
    %v258 = vrot.slane %v257, 4
    %v259 = vadd.f32 %v257, %v258
    %v260 = vrot.slane %v259, 2
    %v261 = vadd.f32 %v259, %v260
    %v262 = vrot.slane %v261, 1
    %v263 = vadd.f32 %v261, %v262
    %v264 = vsel %vm186, %v159, 0.0
    %v265 = vrot.slane %v264, 4
    %v266 = vadd.f32 %v264, %v265
    %v267 = vrot.slane %v266, 2
    %v268 = vadd.f32 %v266, %v267
    %v269 = vrot.slane %v268, 1
    %v270 = vadd.f32 %v268, %v269
    %v271 = vsel %vm186, %v128, 0.0
    %v272 = vrot.slane %v271, 4
    %v273 = vadd.f32 %v271, %v272
    %v274 = vrot.slane %v273, 2
    %v275 = vadd.f32 %v273, %v274
    %v276 = vrot.slane %v275, 1
    %v277 = vadd.f32 %v275, %v276
    %v278 = vsel %vm186, %v160, 0.0
    %v279 = vrot.slane %v278, 4
    %v280 = vadd.f32 %v278, %v279
    %v281 = vrot.slane %v280, 2
    %v282 = vadd.f32 %v280, %v281
    %v283 = vrot.slane %v282, 1
    %v284 = vadd.f32 %v282, %v283
    %v285 = vsel %vm186, %v129, 0.0
    %v286 = vrot.slane %v285, 4
    %v287 = vadd.f32 %v285, %v286
    %v288 = vrot.slane %v287, 2
    %v289 = vadd.f32 %v287, %v288
    %v290 = vrot.slane %v289, 1
    %v291 = vadd.f32 %v289, %v290
    %v292 = vsel %vm186, %v161, 0.0
    %v293 = vrot.slane %v292, 4
    %v294 = vadd.f32 %v292, %v293
    %v295 = vrot.slane %v294, 2
    %v296 = vadd.f32 %v294, %v295
    %v297 = vrot.slane %v296, 1
    %v298 = vadd.f32 %v296, %v297
    %v299 = vsel %vm186, %v130, 0.0
    %v300 = vrot.slane %v299, 4
    %v301 = vadd.f32 %v299, %v300
    %v302 = vrot.slane %v301, 2
    %v303 = vadd.f32 %v301, %v302
    %v304 = vrot.slane %v303, 1
    %v305 = vadd.f32 %v303, %v304
    %v306 = vsel %vm186, %v162, 0.0
    %v307 = vrot.slane %v306, 4
    %v308 = vadd.f32 %v306, %v307
    %v309 = vrot.slane %v308, 2
    %v310 = vadd.f32 %v308, %v309
    %v311 = vrot.slane %v310, 1
    %v312 = vadd.f32 %v310, %v311
    %v313 = vsel %vm186, %v131, 0.0
    %v314 = vrot.slane %v313, 4
    %v315 = vadd.f32 %v313, %v314
    %v316 = vrot.slane %v315, 2
    %v317 = vadd.f32 %v315, %v316
    %v318 = vrot.slane %v317, 1
    %v319 = vadd.f32 %v317, %v318
    %v320 = vsel %vm186, %v163, 0.0
    %v321 = vrot.slane %v320, 4
    %v322 = vadd.f32 %v320, %v321
    %v323 = vrot.slane %v322, 2
    %v324 = vadd.f32 %v322, %v323
    %v325 = vrot.slane %v324, 1
    %v326 = vadd.f32 %v324, %v325
    %v327 = vsel %vm186, %v132, 0.0
    %v328 = vrot.slane %v327, 4
    %v329 = vadd.f32 %v327, %v328
    %v330 = vrot.slane %v329, 2
    %v331 = vadd.f32 %v329, %v330
    %v332 = vrot.slane %v331, 1
    %v333 = vadd.f32 %v331, %v332
    %v334 = vsel %vm186, %v164, 0.0
    %v335 = vrot.slane %v334, 4
    %v336 = vadd.f32 %v334, %v335
    %v337 = vrot.slane %v336, 2
    %v338 = vadd.f32 %v336, %v337
    %v339 = vrot.slane %v338, 1
    %v340 = vadd.f32 %v338, %v339
    %v341 = vsel %vm186, %v133, 0.0
    %v342 = vrot.slane %v341, 4
    %v343 = vadd.f32 %v341, %v342
    %v344 = vrot.slane %v343, 2
    %v345 = vadd.f32 %v343, %v344
    %v346 = vrot.slane %v345, 1
    %v347 = vadd.f32 %v345, %v346
    %v348 = vsel %vm186, %v165, 0.0
    %v349 = vrot.slane %v348, 4
    %v350 = vadd.f32 %v348, %v349
    %v351 = vrot.slane %v350, 2
    %v352 = vadd.f32 %v350, %v351
    %v353 = vrot.slane %v352, 1
    %v354 = vadd.f32 %v352, %v353
    %v355 = vsel %vm186, %v134, 0.0
    %v356 = vrot.slane %v355, 4
    %v357 = vadd.f32 %v355, %v356
    %v358 = vrot.slane %v357, 2
    %v359 = vadd.f32 %v357, %v358
    %v360 = vrot.slane %v359, 1
    %v361 = vadd.f32 %v359, %v360
    %v362 = vsel %vm186, %v166, 0.0
    %v363 = vrot.slane %v362, 4
    %v364 = vadd.f32 %v362, %v363
    %v365 = vrot.slane %v364, 2
    %v366 = vadd.f32 %v364, %v365
    %v367 = vrot.slane %v366, 1
    %v368 = vadd.f32 %v366, %v367
    %v369 = vsel %vm186, %v135, 0.0
    %v370 = vrot.slane %v369, 4
    %v371 = vadd.f32 %v369, %v370
    %v372 = vrot.slane %v371, 2
    %v373 = vadd.f32 %v371, %v372
    %v374 = vrot.slane %v373, 1
    %v375 = vadd.f32 %v373, %v374
    %v376 = vsel %vm186, %v167, 0.0
    %v377 = vrot.slane %v376, 4
    %v378 = vadd.f32 %v376, %v377
    %v379 = vrot.slane %v378, 2
    %v380 = vadd.f32 %v378, %v379
    %v381 = vrot.slane %v380, 1
    %v382 = vadd.f32 %v380, %v381
    %v383 = vsel %vm186, %v136, 0.0
    %v384 = vrot.slane %v383, 4
    %v385 = vadd.f32 %v383, %v384
    %v386 = vrot.slane %v385, 2
    %v387 = vadd.f32 %v385, %v386
    %v388 = vrot.slane %v387, 1
    %v389 = vadd.f32 %v387, %v388
    %v390 = vsel %vm186, %v168, 0.0
    %v391 = vrot.slane %v390, 4
    %v392 = vadd.f32 %v390, %v391
    %v393 = vrot.slane %v392, 2
    %v394 = vadd.f32 %v392, %v393
    %v395 = vrot.slane %v394, 1
    %v396 = vadd.f32 %v394, %v395
    %v397 = vsel %vm186, %v137, 0.0
    %v398 = vrot.slane %v397, 4
    %v399 = vadd.f32 %v397, %v398
    %v400 = vrot.slane %v399, 2
    %v401 = vadd.f32 %v399, %v400
    %v402 = vrot.slane %v401, 1
    %v403 = vadd.f32 %v401, %v402
    %v404 = vsel %vm186, %v169, 0.0
    %v405 = vrot.slane %v404, 4
    %v406 = vadd.f32 %v404, %v405
    %v407 = vrot.slane %v406, 2
    %v408 = vadd.f32 %v406, %v407
    %v409 = vrot.slane %v408, 1
    %v410 = vadd.f32 %v408, %v409
    %v411 = vrcp.pop 4.0
    %v412 = vmul.f32 %v193, %v411
    %v413 = vmul.f32 %v200, %v411
    %v414 = vmul.f32 %v207, %v411
    %v415 = vmul.f32 %v214, %v411
    %v416 = vmul.f32 %v221, %v411
    %v417 = vmul.f32 %v228, %v411
    %v418 = vmul.f32 %v235, %v411
    %v419 = vmul.f32 %v242, %v411
    %v420 = vmul.f32 %v249, %v411
    %v421 = vmul.f32 %v256, %v411
    %v422 = vmul.f32 %v263, %v411
    %v423 = vmul.f32 %v270, %v411
    %v424 = vmul.f32 %v277, %v411
    %v425 = vmul.f32 %v284, %v411
    %v426 = vmul.f32 %v291, %v411
    %v427 = vmul.f32 %v298, %v411
    %v428 = vmul.f32 %v305, %v411
    %v429 = vmul.f32 %v312, %v411
    %v430 = vmul.f32 %v319, %v411
    %v431 = vmul.f32 %v326, %v411
    %v432 = vmul.f32 %v333, %v411
    %v433 = vmul.f32 %v340, %v411
    %v434 = vmul.f32 %v347, %v411
    %v435 = vmul.f32 %v354, %v411
    %v436 = vmul.f32 %v361, %v411
    %v437 = vmul.f32 %v368, %v411
    %v438 = vmul.f32 %v375, %v411
    %v439 = vmul.f32 %v382, %v411
    %v440 = vmul.f32 %v389, %v411
    %v441 = vmul.f32 %v396, %v411
    %v442 = vmul.f32 %v403, %v411
    %v443 = vmul.f32 %v410, %v411
    %v444 = vld [vmem:[#allocation5] sm:$0xff]
    %v445 = vld [vmem:[#allocation5 + $0x8] sm:$0xff]
    %v446 = vld [vmem:[#allocation5 + $0x10] sm:$0xff]
    %v447 = vld [vmem:[#allocation5 + $0x18] sm:$0xff]
    %v448 = vld [vmem:[#allocation5 + $0x20] sm:$0xff]
    %v449 = vld [vmem:[#allocation5 + $0x28] sm:$0xff]
    %v450 = vld [vmem:[#allocation5 + $0x30] sm:$0xff]
    %v451 = vld [vmem:[#allocation5 + $0x38] sm:$0xff]
    %v452 = vld [vmem:[#allocation5 + $0x40] sm:$0xff]
    %v453 = vld [vmem:[#allocation5 + $0x48] sm:$0xff]
    %v454 = vld [vmem:[#allocation5 + $0x50] sm:$0xff]
    %v455 = vld [vmem:[#allocation5 + $0x58] sm:$0xff]
    %v456 = vld [vmem:[#allocation5 + $0x60] sm:$0xff]
    %v457 = vld [vmem:[#allocation5 + $0x68] sm:$0xff]
    %v458 = vld [vmem:[#allocation5 + $0x70] sm:$0xff]
    %v459 = vld [vmem:[#allocation5 + $0x78] sm:$0xff]
    %v460 = vld [vmem:[#allocation5 + $0x80] sm:$0xff]
    %v461 = vld [vmem:[#allocation5 + $0x88] sm:$0xff]
    %v462 = vld [vmem:[#allocation5 + $0x90] sm:$0xff]
    %v463 = vld [vmem:[#allocation5 + $0x98] sm:$0xff]
    %v464 = vld [vmem:[#allocation5 + $0xa0] sm:$0xff]
    %v465 = vld [vmem:[#allocation5 + $0xa8] sm:$0xff]
    %v466 = vld [vmem:[#allocation5 + $0xb0] sm:$0xff]
    %v467 = vld [vmem:[#allocation5 + $0xb8] sm:$0xff]
    %v468 = vld [vmem:[#allocation5 + $0xc0] sm:$0xff]
    %v469 = vld [vmem:[#allocation5 + $0xc8] sm:$0xff]
    %v470 = vld [vmem:[#allocation5 + $0xd0] sm:$0xff]
    %v471 = vld [vmem:[#allocation5 + $0xd8] sm:$0xff]
    %v472 = vld [vmem:[#allocation5 + $0xe0] sm:$0xff]
    %v473 = vld [vmem:[#allocation5 + $0xe8] sm:$0xff]
    %v474 = vld [vmem:[#allocation5 + $0xf0] sm:$0xff]
    %v475 = vld [vmem:[#allocation5 + $0xf8] sm:$0xff]
    %v476 = vld [vmem:[#allocation5 + $0x100] sm:$0xff]
    %v477 = vld [vmem:[#allocation5 + $0x108] sm:$0xff]
    %v478 = vld [vmem:[#allocation5 + $0x110] sm:$0xff]
    %v479 = vld [vmem:[#allocation5 + $0x118] sm:$0xff]
    %v480 = vld [vmem:[#allocation5 + $0x120] sm:$0xff]
    %v481 = vld [vmem:[#allocation5 + $0x128] sm:$0xff]
    %v482 = vld [vmem:[#allocation5 + $0x130] sm:$0xff]
    %v483 = vld [vmem:[#allocation5 + $0x138] sm:$0xff]
    %v484 = vld [vmem:[#allocation5 + $0x140] sm:$0xff]
    %v485 = vld [vmem:[#allocation5 + $0x148] sm:$0xff]
    %v486 = vld [vmem:[#allocation5 + $0x150] sm:$0xff]
    %v487 = vld [vmem:[#allocation5 + $0x158] sm:$0xff]
    %v488 = vld [vmem:[#allocation5 + $0x160] sm:$0xff]
    %v489 = vld [vmem:[#allocation5 + $0x168] sm:$0xff]
    %v490 = vld [vmem:[#allocation5 + $0x170] sm:$0xff]
    %v491 = vld [vmem:[#allocation5 + $0x178] sm:$0xff]
    %v492 = vld [vmem:[#allocation5 + $0x180] sm:$0xff]
    %v493 = vld [vmem:[#allocation5 + $0x188] sm:$0xff]
    %v494 = vld [vmem:[#allocation5 + $0x190] sm:$0xff]
    %v495 = vld [vmem:[#allocation5 + $0x198] sm:$0xff]
    %v496 = vld [vmem:[#allocation5 + $0x1a0] sm:$0xff]
    %v497 = vld [vmem:[#allocation5 + $0x1a8] sm:$0xff]
    %v498 = vld [vmem:[#allocation5 + $0x1b0] sm:$0xff]
    %v499 = vld [vmem:[#allocation5 + $0x1b8] sm:$0xff]
    %v500 = vld [vmem:[#allocation5 + $0x1c0] sm:$0xff]
    %v501 = vld [vmem:[#allocation5 + $0x1c8] sm:$0xff]
    %v502 = vld [vmem:[#allocation5 + $0x1d0] sm:$0xff]
    %v503 = vld [vmem:[#allocation5 + $0x1d8] sm:$0xff]
    %v504 = vld [vmem:[#allocation5 + $0x1e0] sm:$0xff]
    %v505 = vld [vmem:[#allocation5 + $0x1e8] sm:$0xff]
    %v506 = vld [vmem:[#allocation5 + $0x1f0] sm:$0xff]
    %v507 = vld [vmem:[#allocation5 + $0x1f8] sm:$0xff]
    %v508 = vld [vmem:[#allocation5 + $0x200] sm:$0xff]
    %v509 = vld [vmem:[#allocation5 + $0x208] sm:$0xff]
    %v510 = vld [vmem:[#allocation5 + $0x210] sm:$0xff]
    %v511 = vld [vmem:[#allocation5 + $0x218] sm:$0xff]
    %v512 = vld [vmem:[#allocation5 + $0x220] sm:$0xff]
    %v513 = vld [vmem:[#allocation5 + $0x228] sm:$0xff]
    %v514 = vld [vmem:[#allocation5 + $0x230] sm:$0xff]
    %v515 = vld [vmem:[#allocation5 + $0x238] sm:$0xff]
    %v516 = vld [vmem:[#allocation5 + $0x240] sm:$0xff]
    %v517 = vld [vmem:[#allocation5 + $0x248] sm:$0xff]
    %v518 = vld [vmem:[#allocation5 + $0x250] sm:$0xff]
    %v519 = vld [vmem:[#allocation5 + $0x258] sm:$0xff]
    %v520 = vld [vmem:[#allocation5 + $0x260] sm:$0xff]
    %v521 = vld [vmem:[#allocation5 + $0x268] sm:$0xff]
    %v522 = vld [vmem:[#allocation5 + $0x270] sm:$0xff]
    %v523 = vld [vmem:[#allocation5 + $0x278] sm:$0xff]
    %v524 = vld [vmem:[#allocation5 + $0x280] sm:$0xff]
    %v525 = vld [vmem:[#allocation5 + $0x288] sm:$0xff]
    %v526 = vld [vmem:[#allocation5 + $0x290] sm:$0xff]
    %v527 = vld [vmem:[#allocation5 + $0x298] sm:$0xff]
    %v528 = vld [vmem:[#allocation5 + $0x2a0] sm:$0xff]
    %v529 = vld [vmem:[#allocation5 + $0x2a8] sm:$0xff]
    %v530 = vld [vmem:[#allocation5 + $0x2b0] sm:$0xff]
    %v531 = vld [vmem:[#allocation5 + $0x2b8] sm:$0xff]
    %v532 = vld [vmem:[#allocation5 + $0x2c0] sm:$0xff]
    %v533 = vld [vmem:[#allocation5 + $0x2c8] sm:$0xff]
    %v534 = vld [vmem:[#allocation5 + $0x2d0] sm:$0xff]
    %v535 = vld [vmem:[#allocation5 + $0x2d8] sm:$0xff]
    %v536 = vld [vmem:[#allocation5 + $0x2e0] sm:$0xff]
    %v537 = vld [vmem:[#allocation5 + $0x2e8] sm:$0xff]
    %v538 = vld [vmem:[#allocation5 + $0x2f0] sm:$0xff]
    %v539 = vld [vmem:[#allocation5 + $0x2f8] sm:$0xff]
    %v540 = vld [vmem:[#allocation5 + $0x300] sm:$0xff]
    %v541 = vld [vmem:[#allocation5 + $0x308] sm:$0xff]
    %v542 = vld [vmem:[#allocation5 + $0x310] sm:$0xff]
    %v543 = vld [vmem:[#allocation5 + $0x318] sm:$0xff]
    %v544 = vld [vmem:[#allocation5 + $0x320] sm:$0xff]
    %v545 = vld [vmem:[#allocation5 + $0x328] sm:$0xff]
    %v546 = vld [vmem:[#allocation5 + $0x330] sm:$0xff]
    %v547 = vld [vmem:[#allocation5 + $0x338] sm:$0xff]
    %v548 = vld [vmem:[#allocation5 + $0x340] sm:$0xff]
    %v549 = vld [vmem:[#allocation5 + $0x348] sm:$0xff]
    %v550 = vld [vmem:[#allocation5 + $0x350] sm:$0xff]
    %v551 = vld [vmem:[#allocation5 + $0x358] sm:$0xff]
    %v552 = vld [vmem:[#allocation5 + $0x360] sm:$0xff]
    %v553 = vld [vmem:[#allocation5 + $0x368] sm:$0xff]
    %v554 = vld [vmem:[#allocation5 + $0x370] sm:$0xff]
    %v555 = vld [vmem:[#allocation5 + $0x378] sm:$0xff]
    %v556 = vld [vmem:[#allocation5 + $0x380] sm:$0xff]
    %v557 = vld [vmem:[#allocation5 + $0x388] sm:$0xff]
    %v558 = vld [vmem:[#allocation5 + $0x390] sm:$0xff]
    %v559 = vld [vmem:[#allocation5 + $0x398] sm:$0xff]
    %v560 = vld [vmem:[#allocation5 + $0x3a0] sm:$0xff]
    %v561 = vld [vmem:[#allocation5 + $0x3a8] sm:$0xff]
    %v562 = vld [vmem:[#allocation5 + $0x3b0] sm:$0xff]
    %v563 = vld [vmem:[#allocation5 + $0x3b8] sm:$0xff]
    %v564 = vld [vmem:[#allocation5 + $0x3c0] sm:$0xff]
    %v565 = vld [vmem:[#allocation5 + $0x3c8] sm:$0xff]
    %v566 = vld [vmem:[#allocation5 + $0x3d0] sm:$0xff]
    %v567 = vld [vmem:[#allocation5 + $0x3d8] sm:$0xff]
    %v568 = vld [vmem:[#allocation5 + $0x3e0] sm:$0xff]
    %v569 = vld [vmem:[#allocation5 + $0x3e8] sm:$0xff]
    %v570 = vld [vmem:[#allocation5 + $0x3f0] sm:$0xff]
    %v571 = vld [vmem:[#allocation5 + $0x3f8] sm:$0xff]
    %v572 = vld [vmem:[%s2] sm:$0x3]
    %v574 = vlaneseq
    %v575 = vshrl.u32 %v574, 7
    %v576 = vsub.s32 0, %v575
    %v577 = vrot.slane %v572, %v576
    %v578 = vlaneseq
    %v579 = vshrl.u32 %v578, 7
    %v580 = vsub.s32 1, %v579
    %v581 = vrot.slane %v572, %v580
    %vm616 = vcmask 1041409
    %v617 = vsel %vm616, %v416, %v412
    %vm618 = vcmask 1042434
    %v619 = vsel %vm618, %v420, %v617
    %vm620 = vcmask 1043459
    %v621 = vsel %vm620, %v424, %v619
    %vm622 = vcmask 1044484
    %v623 = vsel %vm622, %v428, %v621
    %vm624 = vcmask 1045509
    %v625 = vsel %vm624, %v432, %v623
    %vm626 = vcmask 1046534
    %v627 = vsel %vm626, %v436, %v625
    %vm628 = vcmask 1047559
    %v629 = vsel %vm628, %v440, %v627
    %v630 = vsel %vm616, %v417, %v413
    %v631 = vsel %vm618, %v421, %v630
    %v632 = vsel %vm620, %v425, %v631
    %v633 = vsel %vm622, %v429, %v632
    %v634 = vsel %vm624, %v433, %v633
    %v635 = vsel %vm626, %v437, %v634
    %v636 = vsel %vm628, %v441, %v635
    %v637 = vsel %vm616, %v418, %v414
    %v638 = vsel %vm618, %v422, %v637
    %v639 = vsel %vm620, %v426, %v638
    %v640 = vsel %vm622, %v430, %v639
    %v641 = vsel %vm624, %v434, %v640
    %v642 = vsel %vm626, %v438, %v641
    %v643 = vsel %vm628, %v442, %v642
    %v644 = vsel %vm616, %v419, %v415
    %v645 = vsel %vm618, %v423, %v644
    %v646 = vsel %vm620, %v427, %v645
    %v647 = vsel %vm622, %v431, %v646
    %v648 = vsel %vm624, %v435, %v647
    %v649 = vsel %vm626, %v439, %v648
    %v650 = vsel %vm628, %v443, %v649
    %655 = vmatprep.subr.mxu0 %v445
    %656 = vmatpush1.msra.mxu0 %v444
    %657 = vmatprep.subr.mxu0 %v447
    %658 = vmatpush1.msra.mxu0 %v446
    %659 = vmatprep.subr.mxu0 %v449
    %660 = vmatpush1.msra.mxu0 %v448
    %661 = vmatprep.subr.mxu0 %v451
    %662 = vmatpush1.msra.mxu0 %v450
    %663 = vmatprep.subr.mxu0 %v453
    %664 = vmatpush1.msra.mxu0 %v452
    %665 = vmatprep.subr.mxu0 %v455
    %666 = vmatpush1.msra.mxu0 %v454
    %667 = vmatprep.subr.mxu0 %v457
    %668 = vmatpush1.msra.mxu0 %v456
    %669 = vmatprep.subr.mxu0 %v459
    %670 = vmatpush1.msra.mxu0 %v458
    %671 = vmatprep.subr.mxu0 %v461
    %672 = vmatpush1.msra.mxu0 %v460
    %673 = vmatprep.subr.mxu0 %v463
    %674 = vmatpush1.msra.mxu0 %v462
    %675 = vmatprep.subr.mxu0 %v465
    %676 = vmatpush1.msra.mxu0 %v464
    %677 = vmatprep.subr.mxu0 %v467
    %678 = vmatpush1.msra.mxu0 %v466
    %679 = vmatprep.subr.mxu0 %v469
    %680 = vmatpush1.msra.mxu0 %v468
    %681 = vmatprep.subr.mxu0 %v471
    %682 = vmatpush1.msra.mxu0 %v470
    %683 = vmatprep.subr.mxu0 %v473
    %684 = vmatpush1.msra.mxu0 %v472
    %685 = vmatprep.subr.mxu0 %v475
    %686 = vmatpush1.msra.mxu0 %v474
    %687 = vmatprep.subr.mxu0 %v477
    %688 = vmatpush1.msra.mxu0 %v476
    %689 = vmatprep.subr.mxu0 %v479
    %690 = vmatpush1.msra.mxu0 %v478
    %691 = vmatprep.subr.mxu0 %v481
    %692 = vmatpush1.msra.mxu0 %v480
    %693 = vmatprep.subr.mxu0 %v483
    %694 = vmatpush1.msra.mxu0 %v482
    %695 = vmatprep.subr.mxu0 %v485
    %696 = vmatpush1.msra.mxu0 %v484
    %697 = vmatprep.subr.mxu0 %v487
    %698 = vmatpush1.msra.mxu0 %v486
    %699 = vmatprep.subr.mxu0 %v489
    %700 = vmatpush1.msra.mxu0 %v488
    %701 = vmatprep.subr.mxu0 %v491
    %702 = vmatpush1.msra.mxu0 %v490
    %703 = vmatprep.subr.mxu0 %v493
    %704 = vmatpush1.msra.mxu0 %v492
    %705 = vmatprep.subr.mxu0 %v495
    %706 = vmatpush1.msra.mxu0 %v494
    %707 = vmatprep.subr.mxu0 %v497
    %708 = vmatpush1.msra.mxu0 %v496
    %709 = vmatprep.subr.mxu0 %v499
    %710 = vmatpush1.msra.mxu0 %v498
    %711 = vmatprep.subr.mxu0 %v501
    %712 = vmatpush1.msra.mxu0 %v500
    %713 = vmatprep.subr.mxu0 %v503
    %714 = vmatpush1.msra.mxu0 %v502
    %715 = vmatprep.subr.mxu0 %v505
    %716 = vmatpush1.msra.mxu0 %v504
    %717 = vmatprep.subr.mxu0 %v507
    %718 = vmatpush1.msra.mxu0 %v506
    %719 = vmatprep.mubr.f32.mxu0 %v636
    %720 = vmatmul.mubr.f32.gmra.mrb[0].mxu0 %v629
    %v721 = vpop.f32.mrb[0].mxu0
    %v722 = vadd.f32 %v577, %v721
    %v723 = vpop.f32.mrb[0].mxu0
    %v724 = vadd.f32 %v581, %v723
    %725 = vdwg.mxu0
    %726 = vmatprep.subr.mxu0 %v509
    %727 = vmatpush1.msra.mxu0 %v508
    %728 = vmatprep.subr.mxu0 %v511
    %729 = vmatpush1.msra.mxu0 %v510
    %730 = vmatprep.subr.mxu0 %v513
    %731 = vmatpush1.msra.mxu0 %v512
    %732 = vmatprep.subr.mxu0 %v515
    %733 = vmatpush1.msra.mxu0 %v514
    %734 = vmatprep.subr.mxu0 %v517
    %735 = vmatpush1.msra.mxu0 %v516
    %736 = vmatprep.subr.mxu0 %v519
    %737 = vmatpush1.msra.mxu0 %v518
    %738 = vmatprep.subr.mxu0 %v521
    %739 = vmatpush1.msra.mxu0 %v520
    %740 = vmatprep.subr.mxu0 %v523
    %741 = vmatpush1.msra.mxu0 %v522
    %742 = vmatprep.subr.mxu0 %v525
    %743 = vmatpush1.msra.mxu0 %v524
    %744 = vmatprep.subr.mxu0 %v527
    %745 = vmatpush1.msra.mxu0 %v526
    %746 = vmatprep.subr.mxu0 %v529
    %747 = vmatpush1.msra.mxu0 %v528
    %748 = vmatprep.subr.mxu0 %v531
    %749 = vmatpush1.msra.mxu0 %v530
    %750 = vmatprep.subr.mxu0 %v533
    %751 = vmatpush1.msra.mxu0 %v532
    %752 = vmatprep.subr.mxu0 %v535
    %753 = vmatpush1.msra.mxu0 %v534
    %754 = vmatprep.subr.mxu0 %v537
    %755 = vmatpush1.msra.mxu0 %v536
    %756 = vmatprep.subr.mxu0 %v539
    %757 = vmatpush1.msra.mxu0 %v538
    %758 = vmatprep.subr.mxu0 %v541
    %759 = vmatpush1.msra.mxu0 %v540
    %760 = vmatprep.subr.mxu0 %v543
    %761 = vmatpush1.msra.mxu0 %v542
    %762 = vmatprep.subr.mxu0 %v545
    %763 = vmatpush1.msra.mxu0 %v544
    %764 = vmatprep.subr.mxu0 %v547
    %765 = vmatpush1.msra.mxu0 %v546
    %766 = vmatprep.subr.mxu0 %v549
    %767 = vmatpush1.msra.mxu0 %v548
    %768 = vmatprep.subr.mxu0 %v551
    %769 = vmatpush1.msra.mxu0 %v550
    %770 = vmatprep.subr.mxu0 %v553
    %771 = vmatpush1.msra.mxu0 %v552
    %772 = vmatprep.subr.mxu0 %v555
    %773 = vmatpush1.msra.mxu0 %v554
    %774 = vmatprep.subr.mxu0 %v557
    %775 = vmatpush1.msra.mxu0 %v556
    %776 = vmatprep.subr.mxu0 %v559
    %777 = vmatpush1.msra.mxu0 %v558
    %778 = vmatprep.subr.mxu0 %v561
    %779 = vmatpush1.msra.mxu0 %v560
    %780 = vmatprep.subr.mxu0 %v563
    %781 = vmatpush1.msra.mxu0 %v562
    %782 = vmatprep.subr.mxu0 %v565
    %783 = vmatpush1.msra.mxu0 %v564
    %784 = vmatprep.subr.mxu0 %v567
    %785 = vmatpush1.msra.mxu0 %v566
    %786 = vmatprep.subr.mxu0 %v569
    %787 = vmatpush1.msra.mxu0 %v568
    %788 = vmatprep.subr.mxu0 %v571
    %789 = vmatpush1.msra.mxu0 %v570
    %790 = vmatprep.mubr.f32.mxu0 %v650
    %791 = vmatmul.mubr.f32.gmra.mrb[0].mxu0 %v643
    %v792 = vpop.f32.mrb[0].mxu0
    %v793 = vadd.f32 %v722, %v792
    %v794 = vpop.f32.mrb[0].mxu0
    %v795 = vadd.f32 %v724, %v794
    %796 = vdwg.mxu0
    %v797 = vmul.f32 %v793, 0.2
    %v798 = vmul.f32 %v795, 0.2
    %v799 = vmax.f32 %v793, %v797
    %v800 = vmax.f32 %v795, %v798
    %v801 = vld [vmem:[%s3] sm:$0xff]
    %v802 = vld [vmem:[%s3 + $0x8] sm:$0xff]
    %v803 = vld [vmem:[%s3 + $0x10] sm:$0xff]
    %v804 = vld [vmem:[%s3 + $0x18] sm:$0xff]
    %v805 = vld [vmem:[%s3 + $0x20] sm:$0xff]
    %v806 = vld [vmem:[%s3 + $0x28] sm:$0xff]
    %v807 = vld [vmem:[%s3 + $0x30] sm:$0xff]
    %v808 = vld [vmem:[%s3 + $0x38] sm:$0xff]
    %v809 = vld [vmem:[%s3 + $0x40] sm:$0xff]
    %v810 = vld [vmem:[%s3 + $0x48] sm:$0xff]
    %v811 = vld [vmem:[%s3 + $0x50] sm:$0xff]
    %v812 = vld [vmem:[%s3 + $0x58] sm:$0xff]
    %v813 = vld [vmem:[%s3 + $0x60] sm:$0xff]
    %v814 = vld [vmem:[%s3 + $0x68] sm:$0xff]
    %v815 = vld [vmem:[%s3 + $0x70] sm:$0xff]
    %v816 = vld [vmem:[%s3 + $0x78] sm:$0xff]
    %v817 = vld [vmem:[%s3 + $0x80] sm:$0xff]
    %v818 = vld [vmem:[%s3 + $0x88] sm:$0xff]
    %v819 = vld [vmem:[%s3 + $0x90] sm:$0xff]
    %v820 = vld [vmem:[%s3 + $0x98] sm:$0xff]
    %v821 = vld [vmem:[%s3 + $0xa0] sm:$0xff]
    %v822 = vld [vmem:[%s3 + $0xa8] sm:$0xff]
    %v823 = vld [vmem:[%s3 + $0xb0] sm:$0xff]
    %v824 = vld [vmem:[%s3 + $0xb8] sm:$0xff]
    %v825 = vld [vmem:[%s3 + $0xc0] sm:$0xff]
    %v826 = vld [vmem:[%s3 + $0xc8] sm:$0xff]
    %v827 = vld [vmem:[%s3 + $0xd0] sm:$0xff]
    %v828 = vld [vmem:[%s3 + $0xd8] sm:$0xff]
    %v829 = vld [vmem:[%s3 + $0xe0] sm:$0xff]
    %v830 = vld [vmem:[%s3 + $0xe8] sm:$0xff]
    %v831 = vld [vmem:[%s3 + $0xf0] sm:$0xff]
    %v832 = vld [vmem:[%s3 + $0xf8] sm:$0xff]
    %v833 = vld [vmem:[#allocation7] sm:$0x1]
    %v835 = vlaneseq
    %v836 = vshrl.u32 %v835, 7
    %v837 = vsub.s32 0, %v836
    %v838 = vrot.slane %v833, %v837
    %840 = vmatprep.subr.mxu0 0.0
    %841 = vmatpush1.msra.mxu0 %v801
    %842 = vmatprep.subr.mxu0 0.0
    %843 = vmatpush1.msra.mxu0 %v802
    %844 = vmatprep.subr.mxu0 0.0
    %845 = vmatpush1.msra.mxu0 %v803
    %846 = vmatprep.subr.mxu0 0.0
    %847 = vmatpush1.msra.mxu0 %v804
    %848 = vmatprep.subr.mxu0 0.0
    %849 = vmatpush1.msra.mxu0 %v805
    %850 = vmatprep.subr.mxu0 0.0
    %851 = vmatpush1.msra.mxu0 %v806
    %852 = vmatprep.subr.mxu0 0.0
    %853 = vmatpush1.msra.mxu0 %v807
    %854 = vmatprep.subr.mxu0 0.0
    %855 = vmatpush1.msra.mxu0 %v808
    %856 = vmatprep.subr.mxu0 0.0
    %857 = vmatpush1.msra.mxu0 %v809
    %858 = vmatprep.subr.mxu0 0.0
    %859 = vmatpush1.msra.mxu0 %v810
    %860 = vmatprep.subr.mxu0 0.0
    %861 = vmatpush1.msra.mxu0 %v811
    %862 = vmatprep.subr.mxu0 0.0
    %863 = vmatpush1.msra.mxu0 %v812
    %864 = vmatprep.subr.mxu0 0.0
    %865 = vmatpush1.msra.mxu0 %v813
    %866 = vmatprep.subr.mxu0 0.0
    %867 = vmatpush1.msra.mxu0 %v814
    %868 = vmatprep.subr.mxu0 0.0
    %869 = vmatpush1.msra.mxu0 %v815
    %870 = vmatprep.subr.mxu0 0.0
    %871 = vmatpush1.msra.mxu0 %v816
    %872 = vmatprep.subr.mxu0 0.0
    %873 = vmatpush1.msra.mxu0 %v817
    %874 = vmatprep.subr.mxu0 0.0
    %875 = vmatpush1.msra.mxu0 %v818
    %876 = vmatprep.subr.mxu0 0.0
    %877 = vmatpush1.msra.mxu0 %v819
    %878 = vmatprep.subr.mxu0 0.0
    %879 = vmatpush1.msra.mxu0 %v820
    %880 = vmatprep.subr.mxu0 0.0
    %881 = vmatpush1.msra.mxu0 %v821
    %882 = vmatprep.subr.mxu0 0.0
    %883 = vmatpush1.msra.mxu0 %v822
    %884 = vmatprep.subr.mxu0 0.0
    %885 = vmatpush1.msra.mxu0 %v823
    %886 = vmatprep.subr.mxu0 0.0
    %887 = vmatpush1.msra.mxu0 %v824
    %888 = vmatprep.subr.mxu0 0.0
    %889 = vmatpush1.msra.mxu0 %v825
    %890 = vmatprep.subr.mxu0 0.0
    %891 = vmatpush1.msra.mxu0 %v826
    %892 = vmatprep.subr.mxu0 0.0
    %893 = vmatpush1.msra.mxu0 %v827
    %894 = vmatprep.subr.mxu0 0.0
    %895 = vmatpush1.msra.mxu0 %v828
    %896 = vmatprep.subr.mxu0 0.0
    %897 = vmatpush1.msra.mxu0 %v829
    %898 = vmatprep.subr.mxu0 0.0
    %899 = vmatpush1.msra.mxu0 %v830
    %900 = vmatprep.subr.mxu0 0.0
    %901 = vmatpush1.msra.mxu0 %v831
    %902 = vmatprep.subr.mxu0 0.0
    %903 = vmatpush1.msra.mxu0 %v832
    %904 = vmatprep.mubr.f32.mxu0 %v800
    %905 = vmatmul.mubr.f32.gmra.mrb[0].mxu0 %v799
    %v906 = vpop.f32.mrb[0].mxu0
    %v907 = vadd.f32 %v838, %v906
    %v908 = vpop.f32.mrb[0].mxu0
    %909 = vdwg.mxu0
    %v910 = vrot.slane %v907, 4
    %v911 = vadd.f32 %v907, %v910
    %v912 = vrot.slane %v911, 2
    %v913 = vadd.f32 %v911, %v912
    %v914 = vrot.slane %v913, 1
    %v915 = vadd.f32 %v913, %v914
    %v916 = vrcp.pop 8.0
    %v917 = vmul.f32 %v915, %v916
    %v918 = vsub.f32 %v907, %v917
    %v919 = vmul.f32 %v918, %v918
    %v920 = vrot.slane %v919, 4
    %v921 = vadd.f32 %v919, %v920
    %v922 = vrot.slane %v921, 2
    %v923 = vadd.f32 %v921, %v922
    %v924 = vrot.slane %v923, 1
    %v925 = vadd.f32 %v923, %v924
    %v926 = vmul.f32 %v925, %v916
    %v927 = vadd.f32 %v926, 1e-05
    %v928 = vrsqrt.pop %v927
    %v929 = vmul.f32 %v918, %v928
    %v930 = vld [vmem:[#allocation8] sm:$0x1]
    %v932 = vlaneseq
    %v933 = vshrl.u32 %v932, 7
    %v934 = vsub.s32 0, %v933
    %v935 = vrot.slane %v930, %v934
    %v937 = vmul.f32 %v929, %v935
    %v938 = vld [vmem:[#allocation10] sm:$0x1]
    %v940 = vlaneseq
    %v941 = vshrl.u32 %v940, 7
    %v942 = vsub.s32 0, %v941
    %v943 = vrot.slane %v938, %v942
    %v945 = vadd.f32 %v937, %v943
    %v946 = vmul.f32 %v945, 0.2
    %v947 = vmax.f32 %v945, %v946
    %v948 = vld [vmem:[%s7] sm:$0xff]
    %v949 = vld [vmem:[%s7 + $0x8] sm:$0xff]
    %v950 = vld [vmem:[%s7 + $0x10] sm:$0xff]
    %v951 = vld [vmem:[%s7 + $0x18] sm:$0xff]
    %v952 = vld [vmem:[%s7 + $0x20] sm:$0xff]
    %v953 = vld [vmem:[%s7 + $0x28] sm:$0xff]
    %v954 = vld [vmem:[%s7 + $0x30] sm:$0xff]
    %v955 = vld [vmem:[%s7 + $0x38] sm:$0xff]
    %v956 = vld [vmem:[%s7 + $0x40] sm:$0xff]
    %v957 = vld [vmem:[%s7 + $0x48] sm:$0xff]
    %v958 = vld [vmem:[%s7 + $0x50] sm:$0xff]
    %v959 = vld [vmem:[%s7 + $0x58] sm:$0xff]
    %v960 = vld [vmem:[%s7 + $0x60] sm:$0xff]
    %v961 = vld [vmem:[%s7 + $0x68] sm:$0xff]
    %v962 = vld [vmem:[%s7 + $0x70] sm:$0xff]
    %v963 = vld [vmem:[%s7 + $0x78] sm:$0xff]
    %v964 = vld [vmem:[#allocation11] sm:$0x1]
    %v966 = vlaneseq
    %v967 = vshrl.u32 %v966, 7
    %v968 = vsub.s32 0, %v967
    %v969 = vrot.slane %v964, %v968
    %971 = vmatprep.subr.mxu0 0.0
    %972 = vmatpush1.msra.mxu0 %v948
    %973 = vmatprep.subr.mxu0 0.0
    %974 = vmatpush1.msra.mxu0 %v949
    %975 = vmatprep.subr.mxu0 0.0
    %976 = vmatpush1.msra.mxu0 %v950
    %977 = vmatprep.subr.mxu0 0.0
    %978 = vmatpush1.msra.mxu0 %v951
    %979 = vmatprep.subr.mxu0 0.0
    %980 = vmatpush1.msra.mxu0 %v952
    %981 = vmatprep.subr.mxu0 0.0
    %982 = vmatpush1.msra.mxu0 %v953
    %983 = vmatprep.subr.mxu0 0.0
    %984 = vmatpush1.msra.mxu0 %v954
    %985 = vmatprep.subr.mxu0 0.0
    %986 = vmatpush1.msra.mxu0 %v955
    %987 = vmatprep.subr.mxu0 0.0
    %988 = vmatpush1.msra.mxu0 %v956
    %989 = vmatprep.subr.mxu0 0.0
    %990 = vmatpush1.msra.mxu0 %v957
    %991 = vmatprep.subr.mxu0 0.0
    %992 = vmatpush1.msra.mxu0 %v958
    %993 = vmatprep.subr.mxu0 0.0
    %994 = vmatpush1.msra.mxu0 %v959
    %995 = vmatprep.subr.mxu0 0.0
    %996 = vmatpush1.msra.mxu0 %v960
    %997 = vmatprep.subr.mxu0 0.0
    %998 = vmatpush1.msra.mxu0 %v961
    %999 = vmatprep.subr.mxu0 0.0
    %1000 = vmatpush1.msra.mxu0 %v962
    %1001 = vmatprep.subr.mxu0 0.0
    %1002 = vmatpush1.msra.mxu0 %v963
    %1003 = vmatprep.subr.mxu0 0.0
    %1004 = vmatpush1.msra.mxu0 0.0
    %1005 = vmatprep.subr.mxu0 0.0
    %1006 = vmatpush1.msra.mxu0 0.0
    %1007 = vmatprep.subr.mxu0 0.0
    %1008 = vmatpush1.msra.mxu0 0.0
    %1009 = vmatprep.subr.mxu0 0.0
    %1010 = vmatpush1.msra.mxu0 0.0
    %1011 = vmatprep.subr.mxu0 0.0
    %1012 = vmatpush1.msra.mxu0 0.0
    %1013 = vmatprep.subr.mxu0 0.0
    %1014 = vmatpush1.msra.mxu0 0.0
    %1015 = vmatprep.subr.mxu0 0.0
    %1016 = vmatpush1.msra.mxu0 0.0
    %1017 = vmatprep.subr.mxu0 0.0
    %1018 = vmatpush1.msra.mxu0 0.0
    %1019 = vmatprep.subr.mxu0 0.0
    %1020 = vmatpush1.msra.mxu0 0.0
    %1021 = vmatprep.subr.mxu0 0.0
    %1022 = vmatpush1.msra.mxu0 0.0
    %1023 = vmatprep.subr.mxu0 0.0
    %1024 = vmatpush1.msra.mxu0 0.0
    %1025 = vmatprep.subr.mxu0 0.0
    %1026 = vmatpush1.msra.mxu0 0.0
    %1027 = vmatprep.subr.mxu0 0.0
    %1028 = vmatpush1.msra.mxu0 0.0
    %1029 = vmatprep.subr.mxu0 0.0
    %1030 = vmatpush1.msra.mxu0 0.0
    %1031 = vmatprep.subr.mxu0 0.0
    %1032 = vmatpush1.msra.mxu0 0.0
    %1033 = vmatprep.subr.mxu0 0.0
    %1034 = vmatpush1.msra.mxu0 0.0
    %1035 = vmatprep.mubr.f32.mxu0 0.0
    %1036 = vmatmul.mubr.f32.gmra.mrb[0].mxu0 %v947
    %v1037 = vpop.f32.mrb[0].mxu0
    %v1038 = vadd.f32 %v969, %v1037
    %v1039 = vpop.f32.mrb[0].mxu0
    %1040 = vdwg.mxu0
    %v1041 = vmul.f32 %v1038, 0.2
    %v1042 = vmax.f32 %v1038, %v1041
    %v1043 = vld [vmem:[%s9] sm:$0xff]
    %v1044 = vld [vmem:[%s9 + $0x8] sm:$0xff]
    %v1045 = vld [vmem:[%s9 + $0x10] sm:$0xff]
    %v1046 = vld [vmem:[%s9 + $0x18] sm:$0xff]
    %v1047 = vld [vmem:[%s9 + $0x20] sm:$0xff]
    %v1048 = vld [vmem:[%s9 + $0x28] sm:$0xff]
    %v1049 = vld [vmem:[%s9 + $0x30] sm:$0xff]
    %v1050 = vld [vmem:[%s9 + $0x38] sm:$0xff]
    %v1051 = vld [vmem:[%s10] sm:$0x1]
    %v1053 = vlaneseq
    %v1054 = vshrl.u32 %v1053, 7
    %v1055 = vsub.s32 0, %v1054
    %v1056 = vrot.slane %v1051, %v1055
    %vm1058 = vcmask 523264
    %v1060 = vsel %vm1058, %v1042, 0
    %1062 = vmatprep.subr.mxu0 0.0
    %1063 = vmatpush1.msra.mxu0 %v1043
    %1064 = vmatprep.subr.mxu0 0.0
    %1065 = vmatpush1.msra.mxu0 %v1044
    %1066 = vmatprep.subr.mxu0 0.0
    %1067 = vmatpush1.msra.mxu0 %v1045
    %1068 = vmatprep.subr.mxu0 0.0
    %1069 = vmatpush1.msra.mxu0 %v1046
    %1070 = vmatprep.subr.mxu0 0.0
    %1071 = vmatpush1.msra.mxu0 %v1047
    %1072 = vmatprep.subr.mxu0 0.0
    %1073 = vmatpush1.msra.mxu0 %v1048
    %1074 = vmatprep.subr.mxu0 0.0
    %1075 = vmatpush1.msra.mxu0 %v1049
    %1076 = vmatprep.subr.mxu0 0.0
    %1077 = vmatpush1.msra.mxu0 %v1050
    %1078 = vmatprep.subr.mxu0 0.0
    %1079 = vmatpush1.msra.mxu0 0.0
    %1080 = vmatprep.subr.mxu0 0.0
    %1081 = vmatpush1.msra.mxu0 0.0
    %1082 = vmatprep.subr.mxu0 0.0
    %1083 = vmatpush1.msra.mxu0 0.0
    %1084 = vmatprep.subr.mxu0 0.0
    %1085 = vmatpush1.msra.mxu0 0.0
    %1086 = vmatprep.subr.mxu0 0.0
    %1087 = vmatpush1.msra.mxu0 0.0
    %1088 = vmatprep.subr.mxu0 0.0
    %1089 = vmatpush1.msra.mxu0 0.0
    %1090 = vmatprep.subr.mxu0 0.0
    %1091 = vmatpush1.msra.mxu0 0.0
    %1092 = vmatprep.subr.mxu0 0.0
    %1093 = vmatpush1.msra.mxu0 0.0
    %1094 = vmatprep.subr.mxu0 0.0
    %1095 = vmatpush1.msra.mxu0 0.0
    %1096 = vmatprep.subr.mxu0 0.0
    %1097 = vmatpush1.msra.mxu0 0.0
    %1098 = vmatprep.subr.mxu0 0.0
    %1099 = vmatpush1.msra.mxu0 0.0
    %1100 = vmatprep.subr.mxu0 0.0
    %1101 = vmatpush1.msra.mxu0 0.0
    %1102 = vmatprep.subr.mxu0 0.0
    %1103 = vmatpush1.msra.mxu0 0.0
    %1104 = vmatprep.subr.mxu0 0.0
    %1105 = vmatpush1.msra.mxu0 0.0
    %1106 = vmatprep.subr.mxu0 0.0
    %1107 = vmatpush1.msra.mxu0 0.0
    %1108 = vmatprep.subr.mxu0 0.0
    %1109 = vmatpush1.msra.mxu0 0.0
    %1110 = vmatprep.subr.mxu0 0.0
    %1111 = vmatpush1.msra.mxu0 0.0
    %1112 = vmatprep.subr.mxu0 0.0
    %1113 = vmatpush1.msra.mxu0 0.0
    %1114 = vmatprep.subr.mxu0 0.0
    %1115 = vmatpush1.msra.mxu0 0.0
    %1116 = vmatprep.subr.mxu0 0.0
    %1117 = vmatpush1.msra.mxu0 0.0
    %1118 = vmatprep.subr.mxu0 0.0
    %1119 = vmatpush1.msra.mxu0 0.0
    %1120 = vmatprep.subr.mxu0 0.0
    %1121 = vmatpush1.msra.mxu0 0.0
    %1122 = vmatprep.subr.mxu0 0.0
    %1123 = vmatpush1.msra.mxu0 0.0
    %1124 = vmatprep.subr.mxu0 0.0
    %1125 = vmatpush1.msra.mxu0 0.0
    %1126 = vmatprep.mubr.f32.mxu0 0.0
    %1127 = vmatmul.mubr.f32.gmra.mrb[0].mxu0 %v1060
    %v1128 = vpop.f32.mrb[0].mxu0
    %v1129 = vadd.f32 %v1056, %v1128
    %v1130 = vpop.f32.mrb[0].mxu0
    %1131 = vdwg.mxu0
    %v1132 = vmul.f32 %v1129, 0.2
    %v1133 = vmax.f32 %v1129, %v1132
    %v1134 = vld [vmem:[%s11] sm:$0xff]
    %v1135 = vld [vmem:[%s11 + $0x8] sm:$0xff]
    %v1136 = vld [vmem:[%s11 + $0x10] sm:$0xff]
    %v1137 = vld [vmem:[%s11 + $0x18] sm:$0xff]
    %v1138 = vld [vmem:[%s12] sm:$0x1]
    %v1140 = vlaneseq
    %v1141 = vshrl.u32 %v1140, 7
    %v1142 = vsub.s32 0, %v1141
    %v1143 = vrot.slane %v1138, %v1142
    %vm1145 = vcmask 261120
    %v1147 = vsel %vm1145, %v1133, 0
    %1149 = vmatprep.subr.mxu0 0.0
    %1150 = vmatpush1.msra.mxu0 %v1134
    %1151 = vmatprep.subr.mxu0 0.0
    %1152 = vmatpush1.msra.mxu0 %v1135
    %1153 = vmatprep.subr.mxu0 0.0
    %1154 = vmatpush1.msra.mxu0 %v1136
    %1155 = vmatprep.subr.mxu0 0.0
    %1156 = vmatpush1.msra.mxu0 %v1137
    %1157 = vmatprep.subr.mxu0 0.0
    %1158 = vmatpush1.msra.mxu0 0.0
    %1159 = vmatprep.subr.mxu0 0.0
    %1160 = vmatpush1.msra.mxu0 0.0
    %1161 = vmatprep.subr.mxu0 0.0
    %1162 = vmatpush1.msra.mxu0 0.0
    %1163 = vmatprep.subr.mxu0 0.0
    %1164 = vmatpush1.msra.mxu0 0.0
    %1165 = vmatprep.subr.mxu0 0.0
    %1166 = vmatpush1.msra.mxu0 0.0
    %1167 = vmatprep.subr.mxu0 0.0
    %1168 = vmatpush1.msra.mxu0 0.0
    %1169 = vmatprep.subr.mxu0 0.0
    %1170 = vmatpush1.msra.mxu0 0.0
    %1171 = vmatprep.subr.mxu0 0.0
    %1172 = vmatpush1.msra.mxu0 0.0
    %1173 = vmatprep.subr.mxu0 0.0
    %1174 = vmatpush1.msra.mxu0 0.0
    %1175 = vmatprep.subr.mxu0 0.0
    %1176 = vmatpush1.msra.mxu0 0.0
    %1177 = vmatprep.subr.mxu0 0.0
    %1178 = vmatpush1.msra.mxu0 0.0
    %1179 = vmatprep.subr.mxu0 0.0
    %1180 = vmatpush1.msra.mxu0 0.0
    %1181 = vmatprep.subr.mxu0 0.0
    %1182 = vmatpush1.msra.mxu0 0.0
    %1183 = vmatprep.subr.mxu0 0.0
    %1184 = vmatpush1.msra.mxu0 0.0
    %1185 = vmatprep.subr.mxu0 0.0
    %1186 = vmatpush1.msra.mxu0 0.0
    %1187 = vmatprep.subr.mxu0 0.0
    %1188 = vmatpush1.msra.mxu0 0.0
    %1189 = vmatprep.subr.mxu0 0.0
    %1190 = vmatpush1.msra.mxu0 0.0
    %1191 = vmatprep.subr.mxu0 0.0
    %1192 = vmatpush1.msra.mxu0 0.0
    %1193 = vmatprep.subr.mxu0 0.0
    %1194 = vmatpush1.msra.mxu0 0.0
    %1195 = vmatprep.subr.mxu0 0.0
    %1196 = vmatpush1.msra.mxu0 0.0
    %1197 = vmatprep.subr.mxu0 0.0
    %1198 = vmatpush1.msra.mxu0 0.0
    %1199 = vmatprep.subr.mxu0 0.0
    %1200 = vmatpush1.msra.mxu0 0.0
    %1201 = vmatprep.subr.mxu0 0.0
    %1202 = vmatpush1.msra.mxu0 0.0
    %1203 = vmatprep.subr.mxu0 0.0
    %1204 = vmatpush1.msra.mxu0 0.0
    %1205 = vmatprep.subr.mxu0 0.0
    %1206 = vmatpush1.msra.mxu0 0.0
    %1207 = vmatprep.subr.mxu0 0.0
    %1208 = vmatpush1.msra.mxu0 0.0
    %1209 = vmatprep.subr.mxu0 0.0
    %1210 = vmatpush1.msra.mxu0 0.0
    %1211 = vmatprep.subr.mxu0 0.0
    %1212 = vmatpush1.msra.mxu0 0.0
    %1213 = vmatprep.mubr.f32.mxu0 0.0
    %1214 = vmatmul.mubr.f32.gmra.mrb[0].mxu0 %v1147
    %v1215 = vpop.f32.mrb[0].mxu0
    %v1216 = vadd.f32 %v1143, %v1215
    %v1217 = vpop.f32.mrb[0].mxu0
    %1218 = vdwg.mxu0
    %vm1219 = vcmask 80896
    %1220 = vst.msk [vmem:[#allocation14] sm:$0xff] %vm1219, %v1216
    %v1221 = vsub.f32 0.0, %v1216
    %v1222 = vmul.f32 %v1221, 1.442695
    %v1223 = vpow.pop %v1222
    %v1224 = vadd.f32 %v1223, 1.0
    %v1225 = vrcp.pop %v1224
    %v1226 = vmul.f32 1.0, %v1225
    %1227 = vst.msk [vmem:[#allocation13] sm:$0xff] %vm1219, %v1226
    // Predicated region
    $region78: #{tpu_custom_call.1} parent=1 // pred_check
      _
    $region79: #{tpu_custom_call.1} parent=1 // pred_check_branch
      %1229 = sbr.rel (0) target = $region81
    $region80: #{tpu_custom_call.1} parent=1 // pred_region
      %s1231 = ssub.s32 128, 128
      %1232 = vsyncadd [#allocation4], %s1231
      %s1234 = sshll.u32 [#allocation13], 4
      %s1235 = int_to_ptr.vmem [resolvable:$true] %s1234
      %1237 = dma.vmem_to_hbm [thread:$0]  %s1235, 128, %s13, [#allocation4]
    $region81: #{tpu_custom_call.1} parent=1 // pred_fallthru
      _
    // Predicated region
    $region82: #{tpu_custom_call.1} parent=1 // pred_check
      _
    $region83: #{tpu_custom_call.1} parent=1 // pred_check_branch
      %1239 = sbr.rel (0) target = $region85
    $region84: #{tpu_custom_call.1} parent=1 // pred_region
      %s1241 = ssub.s32 128, 128
      %1242 = vsyncadd [#allocation15], %s1241
      %s1244 = sshll.u32 [#allocation14], 4
      %s1245 = int_to_ptr.vmem [resolvable:$true] %s1244
      %1247 = dma.vmem_to_hbm [thread:$0]  %s1245, 128, %s14, [#allocation15]
    $region85: #{tpu_custom_call.1} parent=1 // pred_fallthru
      _
    // Predicated region
    $region86: #{tpu_custom_call.1} parent=1 // pred_check
      _
    $region87: #{tpu_custom_call.1} parent=1 // pred_check_branch
      %1249 = sbr.rel (0) target = $region89
    $region88: #{tpu_custom_call.1} parent=1 // pred_region
      %1250 = dma.done [#allocation4], 128
    $region89: #{tpu_custom_call.1} parent=1 // pred_fallthru
      _
    // Predicated region
    $region90: #{tpu_custom_call.1} parent=1 // pred_check
      _
    $region91: #{tpu_custom_call.1} parent=1 // pred_check_branch
      %1252 = sbr.rel (0) target = $region93
    $region92: #{tpu_custom_call.1} parent=1 // pred_region
      %1253 = dma.done [#allocation15], 128
    $region93: #{tpu_custom_call.1} parent=1 // pred_fallthru
      _
    %1254 = vsyncpa [#allocation3], 1
    %1255 = vsyncpa [#allocation6], 1
    %1256 = vsyncpa [#allocation9], 1
    %1257 = vsyncpa [#allocation12], 1
    %1258 = vsyncpa [#allocation4], 1
    %1259 = vsyncpa [#allocation15], 1

</llo_original>
